<compile_context>
chip_gen: v7x
topology: tpu7x:2x2x1
jax: 0.10.0
libtpu: 0.0.40
codegen_flags: <defaults>
</compile_context>

<pallas_src>
import functools

import jax
import jax.numpy as jnp
from jax import lax
from jax.experimental import pallas as pl
from jax.experimental.pallas import tpu as pltpu


def _conv_gn_relu_kernel(agg_ref, x_ref, w_ref, b_ref, gamma_ref, beta_ref,
                         o_ref, *, w_img, hw, c_in, c_out, k, pad, margin,
                         group_size, eps, apply_gn, apply_relu):
    # agg_ref:  (C_out, C_out) group-membership matrix (constant input)
    # x_ref:    (1, C_in, HW + 2*margin)  flat image with zero lane margins
    # w_ref:    (K*K, C_out, C_in)        one (C_out, C_in) matrix per tap
    # b/gamma/beta: (C_out, 1) columns    o_ref: (1, C_out, HW)

    # Precompute the horizontal-wrap masks once per distinct shift dw
    # (hoisted out of the tap loop: only 2*pad distinct masks for a KxK conv).
    masks = {}
    if k > 1:
        w_idx = lax.broadcasted_iota(jnp.int32, (c_in, hw), 1) % w_img
        for dw in range(-pad, pad + 1):
            if dw > 0:
                masks[dw] = w_idx < (w_img - dw)
            elif dw < 0:
                masks[dw] = w_idx >= (-dw)

    acc = jnp.zeros((c_out, hw), jnp.float32)
    for kh in range(k):
        for kw in range(k):
            dh = kh - pad
            dw = kw - pad
            start = margin + dh * w_img + dw          # static lane offset
            slab = x_ref[0, :, pl.ds(start, hw)]      # (C_in, HW)
            # Vertical out-of-range taps read the zero margins (correct SAME
            # padding); only horizontal row-wrap reads need masking.
            if dw != 0:
                slab = jnp.where(masks[dw], slab, jnp.zeros_like(slab))
            wt = w_ref[kh * k + kw]                   # (C_out, C_in)
            acc = acc + jnp.dot(wt, slab, preferred_element_type=jnp.float32)

    b = b_ref[...]                                    # (C_out, 1)
    if apply_gn:
        # Per-channel sum / sumsq of the *unbiased* conv output via the MXU
        # (it has slack); the conv-bias contribution to the statistics is
        # added analytically on the tiny (C_out, 1) columns, so no
        # (C_out, HW)-sized bias add is ever materialized.
        ones_col = jnp.ones((hw, 1), jnp.float32)
        s_y = jnp.dot(acc, ones_col, preferred_element_type=jnp.float32)
        q_y = jnp.dot(acc * acc, ones_col, preferred_element_type=jnp.float32)
        s_z = s_y + float(hw) * b                     # stats of (conv + bias)
        q_z = q_y + 2.0 * b * s_y + float(hw) * b * b
        # Aggregate channel stats within each GroupNorm group (constant
        # membership matrix, MXU).
        g_s = jnp.dot(agg_ref[...], s_z, preferred_element_type=jnp.float32)
        g_q = jnp.dot(agg_ref[...], q_z, preferred_element_type=jnp.float32)
        cnt = float(hw * group_size)
        mean = g_s / cnt
        var = g_q / cnt - mean * mean
        inv = lax.rsqrt(var + eps)
        # Fold bias + normalization + affine into one per-channel FMA.
        scale = inv * gamma_ref[...]                  # (C_out, 1)
        offset = (b - mean) * scale + beta_ref[...]   # (C_out, 1)
        y = acc * scale + offset                      # single FMA on (C_out, HW)
    else:
        y = acc + b

    if apply_relu:
        y = jnp.maximum(y, 0.0)

    o_ref[0] = y.astype(o_ref.dtype)


def conv2d_group_forward(x, weight, bias, gamma, beta, *,
                         kernel_size, stride=1, same_padding=True,
                         gn=True, relu=True, num_groups=32, eps=1e-5,
                         compute_dtype=jnp.float32):
    """x: NCHW float32. weight: [C_out, C_in, K, K]. Returns NCHW float32.

    compute_dtype: set to jnp.bfloat16 on v5e/v6e to use the bf16 MXU path
    (f32 accumulation); kept f32 here for bit-tight comparison vs reference.
    """
    assert stride == 1, "only stride=1 implemented"
    assert same_padding, "only SAME padding implemented"  # TODO(synk): valid pad
    n, c_in, h, w = x.shape
    c_out = weight.shape[0]
    k = kernel_size
    pad = (k - 1) // 2
    hw = h * w
    margin = pad * (w + 1)            # max |tap offset| on the flat axis

    # Flat-NCHW view of the input plus zero lane margins: the ONLY HBM-side
    # prep.  No im2col, no transposes (reshape of contiguous dims is free).
    x_flat = x.reshape(n, c_in, hw).astype(compute_dtype)
    x_flat = jnp.pad(x_flat, ((0, 0), (0, 0), (margin, margin)))

    # Weight as (K*K, C_out, C_in): one (C_out, C_in) matrix per tap,
    # tap index = kh*K + kw (matches the shift offsets in the kernel).
    w_taps = weight.transpose(2, 3, 0, 1).reshape(k * k, c_out, c_in)
    w_taps = w_taps.astype(compute_dtype)

    b_col = bias.reshape(c_out, 1).astype(jnp.float32)
    g_col = gamma.reshape(c_out, 1).astype(jnp.float32)
    beta_col = beta.reshape(c_out, 1).astype(jnp.float32)

    if gn:
        assert c_out % num_groups == 0, "GroupNorm needs C_out % 32 == 0"
        group_size = c_out // num_groups
        gidx = jnp.arange(c_out) // group_size
        agg = (gidx[:, None] == gidx[None, :]).astype(jnp.float32)
    else:
        group_size = 1
        agg = jnp.eye(c_out, dtype=jnp.float32)       # unused in kernel

    kernel = functools.partial(
        _conv_gn_relu_kernel, w_img=w, hw=hw, c_in=c_in, c_out=c_out, k=k,
        pad=pad, margin=margin, group_size=group_size, eps=eps,
        apply_gn=gn, apply_relu=relu)

    out = pl.pallas_call(
        kernel,
        out_shape=jax.ShapeDtypeStruct((n, c_out, hw), jnp.float32),
        grid_spec=pltpu.PrefetchScalarGridSpec(
            num_scalar_prefetch=0,
            grid=(n,),                                 # batch axis
            in_specs=[
                pl.BlockSpec((c_out, c_out), lambda i: (0, 0)),          # agg
                pl.BlockSpec((1, c_in, hw + 2 * margin),
                             lambda i: (i, 0, 0)),                       # x
                pl.BlockSpec((k * k, c_out, c_in), lambda i: (0, 0, 0)), # W taps
                pl.BlockSpec((c_out, 1), lambda i: (0, 0)),              # bias
                pl.BlockSpec((c_out, 1), lambda i: (0, 0)),              # gamma
                pl.BlockSpec((c_out, 1), lambda i: (0, 0)),              # beta
            ],
            out_specs=pl.BlockSpec((1, c_out, hw), lambda i: (i, 0, 0)),
        ),
        compiler_params=pltpu.CompilerParams(
            # "parallel" batch axis: v7x shards samples across its 2 TCs.
            # (On single-TC v5e/v6e with larger N one could instead fold the
            # batch into one block to avoid ~0.35us/step loop overhead.)
            dimension_semantics=("parallel",),
            vmem_limit_bytes=32 * 1024 * 1024,
        ),
    )(agg, x_flat, w_taps, b_col, g_col, beta_col)

    # (N, C_out, H*W) is flat NCHW already — reshape only, no transpose.
    return out.reshape(n, c_out, h, w)


def _reference(x, weight, bias, gamma, beta, *, gn, relu, num_groups=32, eps=1e-5):
    y = lax.conv_general_dilated(
        x, weight, window_strides=(1, 1), padding="SAME",
        dimension_numbers=("NCHW", "OIHW", "NCHW"))
    y = y + bias[None, :, None, None]
    if gn:
        n, c, h, w = y.shape
        yg = y.reshape(n, num_groups, c // num_groups, h, w)
        mean = yg.mean(axis=(2, 3, 4), keepdims=True)
        var = yg.var(axis=(2, 3, 4), keepdims=True)
        yg = (yg - mean) * lax.rsqrt(var + eps)
        y = yg.reshape(n, c, h, w) * gamma[None, :, None, None] + beta[None, :, None, None]
    if relu:
        y = jnp.maximum(y, 0.0)
    return y


if __name__ == "__main__":
    # Module config: Conv2dGroup(in_channels=4, out_channels=64, kernel_size=3,
    #                            stride=1, relu=True, same_padding=True, gn=True)
    in_channels, out_channels, kernel_size = 4, 64, 3
    N, H, W = 2, 16, 16

    key = jax.random.PRNGKey(0)
    kx, kw, kb = jax.random.split(key, 3)
    x = jax.random.normal(kx, (N, in_channels, H, W), dtype=jnp.float32)
    fan_in = in_channels * kernel_size * kernel_size
    weight = jax.random.normal(
        kw, (out_channels, in_channels, kernel_size, kernel_size),
        dtype=jnp.float32) * (1.0 / fan_in ** 0.5)
    bias = jax.random.normal(kb, (out_channels,), dtype=jnp.float32) * 0.1
    gamma = jnp.ones((out_channels,), dtype=jnp.float32)   # GroupNorm defaults
    beta = jnp.zeros((out_channels,), dtype=jnp.float32)

    out = conv2d_group_forward(
        x, weight, bias, gamma, beta,
        kernel_size=kernel_size, stride=1, same_padding=True, gn=True, relu=True)
    out = jax.block_until_ready(out)

    ref = _reference(x, weight, bias, gamma, beta, gn=True, relu=True)
    assert out.shape == (N, out_channels, H, W)
    assert jnp.allclose(out, ref, atol=1e-4, rtol=1e-4), "mismatch vs reference"

    print("KERNEL_OK")
</pallas_src>

<mosaic_0001>
module attributes {stable_mosaic.version = 11 : i64} {
  func.func @_conv_gn_relu_kernel(%arg0: i32, %arg1: memref<64x64xf32, #tpu.memory_space<vmem>>, %arg2: memref<1x4x290xf32, #tpu.memory_space<vmem>>, %arg3: memref<9x64x4xf32, #tpu.memory_space<vmem>>, %arg4: memref<64x1xf32, #tpu.memory_space<vmem>>, %arg5: memref<64x1xf32, #tpu.memory_space<vmem>>, %arg6: memref<64x1xf32, #tpu.memory_space<vmem>>, %arg7: memref<1x64x256xf32, #tpu.memory_space<vmem>>) attributes {dimension_semantics = [#tpu.dimension_semantics<parallel>], iteration_bounds = array<i64: 2>, scalar_prefetch = 0 : i64, scratch_operands = 0 : i64, tpu.core_type = #tpu.core_type<tc>, window_params = [{pipeline_mode = #tpu.pipeline_mode<synchronous>, transform_indices = @transform_0, window_bounds = array<i64: 64, 64>}, {transform_indices = @transform_1, window_bounds = array<i64: 1, 4, 290>}, {pipeline_mode = #tpu.pipeline_mode<synchronous>, transform_indices = @transform_2, window_bounds = array<i64: 9, 64, 4>}, {pipeline_mode = #tpu.pipeline_mode<synchronous>, transform_indices = @transform_3, window_bounds = array<i64: 64, 1>}, {pipeline_mode = #tpu.pipeline_mode<synchronous>, transform_indices = @transform_4, window_bounds = array<i64: 64, 1>}, {pipeline_mode = #tpu.pipeline_mode<synchronous>, transform_indices = @transform_5, window_bounds = array<i64: 64, 1>}, {transform_indices = @transform_6, window_bounds = array<i64: 1, 64, 256>}]} {
    %0 = tpu.iota {dimensions = array<i32: 1>} : vector<4x256xi32>
    %c16_i32 = arith.constant 16 : i32
    %c0_i32 = arith.constant 0 : i32
    %1 = arith.cmpi eq, %c16_i32, %c0_i32 : i32
    %c1_i32 = arith.constant 1 : i32
    %2 = arith.select %1, %c1_i32, %c16_i32 : i32
    %3 = vector.broadcast %2 : i32 to vector<4x256xi32>
    %4 = arith.remsi %0, %3 : vector<4x256xi32>
    %c0_i32_0 = arith.constant 0 : i32
    %5 = vector.broadcast %c0_i32_0 : i32 to vector<4x256xi32>
    %6 = arith.cmpi ne, %4, %5 : vector<4x256xi32>
    %c0_i32_1 = arith.constant 0 : i32
    %7 = vector.broadcast %c0_i32_1 : i32 to vector<4x256xi32>
    %8 = arith.cmpi slt, %4, %7 : vector<4x256xi32>
    %c0_i32_2 = arith.constant 0 : i32
    %9 = arith.cmpi slt, %2, %c0_i32_2 : i32
    %10 = vector.broadcast %9 : i1 to vector<4x256xi1>
    %11 = vector.broadcast %10 : vector<4x256xi1> to vector<4x256xi1>
    %12 = arith.xori %8, %11 : vector<4x256xi1>
    %13 = arith.andi %12, %6 : vector<4x256xi1>
    %14 = vector.broadcast %2 : i32 to vector<4x256xi32>
    %15 = arith.addi %4, %14 : vector<4x256xi32>
    %16 = arith.select %13, %15, %4 : vector<4x256xi1>, vector<4x256xi32>
    %c1_i32_3 = arith.constant 1 : i32
    %17 = vector.broadcast %c1_i32_3 : i32 to vector<4x256xi32>
    %18 = arith.cmpi sge, %16, %17 : vector<4x256xi32>
    %c15_i32 = arith.constant 15 : i32
    %19 = vector.broadcast %c15_i32 : i32 to vector<4x256xi32>
    %20 = arith.cmpi slt, %16, %19 : vector<4x256xi32>
    %cst = arith.constant 0.000000e+00 : f32
    %21 = vector.broadcast %cst : f32 to vector<64x256xf32>
    %c0 = arith.constant 0 : index
    %c0_4 = arith.constant 0 : index
    %c0_5 = arith.constant 0 : index
    %22 = vector.load %arg2[%c0, %c0_4, %c0_5] : memref<1x4x290xf32, #tpu.memory_space<vmem>>, vector<1x4x256xf32>
    %23 = vector.shape_cast %22 : vector<1x4x256xf32> to vector<4x256xf32>
    %cst_6 = arith.constant 0.000000e+00 : f32
    %24 = vector.broadcast %cst_6 : f32 to vector<4x256xf32>
    %25 = arith.select %18, %23, %24 : vector<4x256xi1>, vector<4x256xf32>
    %c0_7 = arith.constant 0 : index
    %c0_8 = arith.constant 0 : index
    %c0_9 = arith.constant 0 : index
    %26 = vector.load %arg3[%c0_7, %c0_8, %c0_9] : memref<9x64x4xf32, #tpu.memory_space<vmem>>, vector<1x64x4xf32>
    %27 = vector.shape_cast %26 : vector<1x64x4xf32> to vector<64x4xf32>
    %cst_10 = arith.constant dense<0.000000e+00> : vector<64x256xf32>
    %28 = tpu.matmul %27, %25, %cst_10 {dimension_numbers = #tpu.dot_dimension_numbers<[1], [0], [0], [1], [0, 0, 1, 1], [], []>} : vector<64x4xf32>, vector<4x256xf32>, vector<64x256xf32> -> vector<64x256xf32>
    %29 = arith.addf %21, %28 : vector<64x256xf32>
    %c0_11 = arith.constant 0 : index
    %c0_12 = arith.constant 0 : index
    %c1 = arith.constant 1 : index
    %30 = vector.load %arg2[%c0_11, %c0_12, %c1] : memref<1x4x290xf32, #tpu.memory_space<vmem>>, vector<1x4x256xf32>
    %31 = vector.shape_cast %30 : vector<1x4x256xf32> to vector<4x256xf32>
    %c1_13 = arith.constant 1 : index
    %c0_14 = arith.constant 0 : index
    %c0_15 = arith.constant 0 : index
    %32 = vector.load %arg3[%c1_13, %c0_14, %c0_15] : memref<9x64x4xf32, #tpu.memory_space<vmem>>, vector<1x64x4xf32>
    %33 = vector.shape_cast %32 : vector<1x64x4xf32> to vector<64x4xf32>
    %cst_16 = arith.constant dense<0.000000e+00> : vector<64x256xf32>
    %34 = tpu.matmul %33, %31, %cst_16 {dimension_numbers = #tpu.dot_dimension_numbers<[1], [0], [0], [1], [0, 0, 1, 1], [], []>} : vector<64x4xf32>, vector<4x256xf32>, vector<64x256xf32> -> vector<64x256xf32>
    %35 = arith.addf %29, %34 : vector<64x256xf32>
    %c0_17 = arith.constant 0 : index
    %c0_18 = arith.constant 0 : index
    %c2 = arith.constant 2 : index
    %36 = vector.load %arg2[%c0_17, %c0_18, %c2] : memref<1x4x290xf32, #tpu.memory_space<vmem>>, vector<1x4x256xf32>
    %37 = vector.shape_cast %36 : vector<1x4x256xf32> to vector<4x256xf32>
    %cst_19 = arith.constant 0.000000e+00 : f32
    %38 = vector.broadcast %cst_19 : f32 to vector<4x256xf32>
    %39 = arith.select %20, %37, %38 : vector<4x256xi1>, vector<4x256xf32>
    %c2_20 = arith.constant 2 : index
    %c0_21 = arith.constant 0 : index
    %c0_22 = arith.constant 0 : index
    %40 = vector.load %arg3[%c2_20, %c0_21, %c0_22] : memref<9x64x4xf32, #tpu.memory_space<vmem>>, vector<1x64x4xf32>
    %41 = vector.shape_cast %40 : vector<1x64x4xf32> to vector<64x4xf32>
    %cst_23 = arith.constant dense<0.000000e+00> : vector<64x256xf32>
    %42 = tpu.matmul %41, %39, %cst_23 {dimension_numbers = #tpu.dot_dimension_numbers<[1], [0], [0], [1], [0, 0, 1, 1], [], []>} : vector<64x4xf32>, vector<4x256xf32>, vector<64x256xf32> -> vector<64x256xf32>
    %43 = arith.addf %35, %42 : vector<64x256xf32>
    %c0_24 = arith.constant 0 : index
    %c0_25 = arith.constant 0 : index
    %c16 = arith.constant 16 : index
    %44 = vector.load %arg2[%c0_24, %c0_25, %c16] : memref<1x4x290xf32, #tpu.memory_space<vmem>>, vector<1x4x256xf32>
    %45 = vector.shape_cast %44 : vector<1x4x256xf32> to vector<4x256xf32>
    %cst_26 = arith.constant 0.000000e+00 : f32
    %46 = vector.broadcast %cst_26 : f32 to vector<4x256xf32>
    %47 = arith.select %18, %45, %46 : vector<4x256xi1>, vector<4x256xf32>
    %c3 = arith.constant 3 : index
    %c0_27 = arith.constant 0 : index
    %c0_28 = arith.constant 0 : index
    %48 = vector.load %arg3[%c3, %c0_27, %c0_28] : memref<9x64x4xf32, #tpu.memory_space<vmem>>, vector<1x64x4xf32>
    %49 = vector.shape_cast %48 : vector<1x64x4xf32> to vector<64x4xf32>
    %cst_29 = arith.constant dense<0.000000e+00> : vector<64x256xf32>
    %50 = tpu.matmul %49, %47, %cst_29 {dimension_numbers = #tpu.dot_dimension_numbers<[1], [0], [0], [1], [0, 0, 1, 1], [], []>} : vector<64x4xf32>, vector<4x256xf32>, vector<64x256xf32> -> vector<64x256xf32>
    %51 = arith.addf %43, %50 : vector<64x256xf32>
    %c0_30 = arith.constant 0 : index
    %c0_31 = arith.constant 0 : index
    %c17 = arith.constant 17 : index
    %52 = vector.load %arg2[%c0_30, %c0_31, %c17] : memref<1x4x290xf32, #tpu.memory_space<vmem>>, vector<1x4x256xf32>
    %53 = vector.shape_cast %52 : vector<1x4x256xf32> to vector<4x256xf32>
    %c4 = arith.constant 4 : index
    %c0_32 = arith.constant 0 : index
    %c0_33 = arith.constant 0 : index
    %54 = vector.load %arg3[%c4, %c0_32, %c0_33] : memref<9x64x4xf32, #tpu.memory_space<vmem>>, vector<1x64x4xf32>
    %55 = vector.shape_cast %54 : vector<1x64x4xf32> to vector<64x4xf32>
    %cst_34 = arith.constant dense<0.000000e+00> : vector<64x256xf32>
    %56 = tpu.matmul %55, %53, %cst_34 {dimension_numbers = #tpu.dot_dimension_numbers<[1], [0], [0], [1], [0, 0, 1, 1], [], []>} : vector<64x4xf32>, vector<4x256xf32>, vector<64x256xf32> -> vector<64x256xf32>
    %57 = arith.addf %51, %56 : vector<64x256xf32>
    %c0_35 = arith.constant 0 : index
    %c0_36 = arith.constant 0 : index
    %c18 = arith.constant 18 : index
    %58 = vector.load %arg2[%c0_35, %c0_36, %c18] : memref<1x4x290xf32, #tpu.memory_space<vmem>>, vector<1x4x256xf32>
    %59 = vector.shape_cast %58 : vector<1x4x256xf32> to vector<4x256xf32>
    %cst_37 = arith.constant 0.000000e+00 : f32
    %60 = vector.broadcast %cst_37 : f32 to vector<4x256xf32>
    %61 = arith.select %20, %59, %60 : vector<4x256xi1>, vector<4x256xf32>
    %c5 = arith.constant 5 : index
    %c0_38 = arith.constant 0 : index
    %c0_39 = arith.constant 0 : index
    %62 = vector.load %arg3[%c5, %c0_38, %c0_39] : memref<9x64x4xf32, #tpu.memory_space<vmem>>, vector<1x64x4xf32>
    %63 = vector.shape_cast %62 : vector<1x64x4xf32> to vector<64x4xf32>
    %cst_40 = arith.constant dense<0.000000e+00> : vector<64x256xf32>
    %64 = tpu.matmul %63, %61, %cst_40 {dimension_numbers = #tpu.dot_dimension_numbers<[1], [0], [0], [1], [0, 0, 1, 1], [], []>} : vector<64x4xf32>, vector<4x256xf32>, vector<64x256xf32> -> vector<64x256xf32>
    %65 = arith.addf %57, %64 : vector<64x256xf32>
    %c0_41 = arith.constant 0 : index
    %c0_42 = arith.constant 0 : index
    %c32 = arith.constant 32 : index
    %66 = vector.load %arg2[%c0_41, %c0_42, %c32] : memref<1x4x290xf32, #tpu.memory_space<vmem>>, vector<1x4x256xf32>
    %67 = vector.shape_cast %66 : vector<1x4x256xf32> to vector<4x256xf32>
    %cst_43 = arith.constant 0.000000e+00 : f32
    %68 = vector.broadcast %cst_43 : f32 to vector<4x256xf32>
    %69 = arith.select %18, %67, %68 : vector<4x256xi1>, vector<4x256xf32>
    %c6 = arith.constant 6 : index
    %c0_44 = arith.constant 0 : index
    %c0_45 = arith.constant 0 : index
    %70 = vector.load %arg3[%c6, %c0_44, %c0_45] : memref<9x64x4xf32, #tpu.memory_space<vmem>>, vector<1x64x4xf32>
    %71 = vector.shape_cast %70 : vector<1x64x4xf32> to vector<64x4xf32>
    %cst_46 = arith.constant dense<0.000000e+00> : vector<64x256xf32>
    %72 = tpu.matmul %71, %69, %cst_46 {dimension_numbers = #tpu.dot_dimension_numbers<[1], [0], [0], [1], [0, 0, 1, 1], [], []>} : vector<64x4xf32>, vector<4x256xf32>, vector<64x256xf32> -> vector<64x256xf32>
    %73 = arith.addf %65, %72 : vector<64x256xf32>
    %c0_47 = arith.constant 0 : index
    %c0_48 = arith.constant 0 : index
    %c33 = arith.constant 33 : index
    %74 = vector.load %arg2[%c0_47, %c0_48, %c33] : memref<1x4x290xf32, #tpu.memory_space<vmem>>, vector<1x4x256xf32>
    %75 = vector.shape_cast %74 : vector<1x4x256xf32> to vector<4x256xf32>
    %c7 = arith.constant 7 : index
    %c0_49 = arith.constant 0 : index
    %c0_50 = arith.constant 0 : index
    %76 = vector.load %arg3[%c7, %c0_49, %c0_50] : memref<9x64x4xf32, #tpu.memory_space<vmem>>, vector<1x64x4xf32>
    %77 = vector.shape_cast %76 : vector<1x64x4xf32> to vector<64x4xf32>
    %cst_51 = arith.constant dense<0.000000e+00> : vector<64x256xf32>
    %78 = tpu.matmul %77, %75, %cst_51 {dimension_numbers = #tpu.dot_dimension_numbers<[1], [0], [0], [1], [0, 0, 1, 1], [], []>} : vector<64x4xf32>, vector<4x256xf32>, vector<64x256xf32> -> vector<64x256xf32>
    %79 = arith.addf %73, %78 : vector<64x256xf32>
    %c0_52 = arith.constant 0 : index
    %c0_53 = arith.constant 0 : index
    %c34 = arith.constant 34 : index
    %80 = vector.load %arg2[%c0_52, %c0_53, %c34] : memref<1x4x290xf32, #tpu.memory_space<vmem>>, vector<1x4x256xf32>
    %81 = vector.shape_cast %80 : vector<1x4x256xf32> to vector<4x256xf32>
    %cst_54 = arith.constant 0.000000e+00 : f32
    %82 = vector.broadcast %cst_54 : f32 to vector<4x256xf32>
    %83 = arith.select %20, %81, %82 : vector<4x256xi1>, vector<4x256xf32>
    %c8 = arith.constant 8 : index
    %c0_55 = arith.constant 0 : index
    %c0_56 = arith.constant 0 : index
    %84 = vector.load %arg3[%c8, %c0_55, %c0_56] : memref<9x64x4xf32, #tpu.memory_space<vmem>>, vector<1x64x4xf32>
    %85 = vector.shape_cast %84 : vector<1x64x4xf32> to vector<64x4xf32>
    %cst_57 = arith.constant dense<0.000000e+00> : vector<64x256xf32>
    %86 = tpu.matmul %85, %83, %cst_57 {dimension_numbers = #tpu.dot_dimension_numbers<[1], [0], [0], [1], [0, 0, 1, 1], [], []>} : vector<64x4xf32>, vector<4x256xf32>, vector<64x256xf32> -> vector<64x256xf32>
    %87 = arith.addf %79, %86 : vector<64x256xf32>
    %c0_58 = arith.constant 0 : index
    %c0_59 = arith.constant 0 : index
    %88 = vector.load %arg4[%c0_58, %c0_59] : memref<64x1xf32, #tpu.memory_space<vmem>>, vector<64x1xf32>
    %cst_60 = arith.constant 1.000000e+00 : f32
    %89 = vector.broadcast %cst_60 : f32 to vector<256x1xf32>
    %cst_61 = arith.constant dense<0.000000e+00> : vector<64x1xf32>
    %90 = tpu.matmul %87, %89, %cst_61 {dimension_numbers = #tpu.dot_dimension_numbers<[1], [0], [0], [1], [0, 0, 1, 1], [], []>} : vector<64x256xf32>, vector<256x1xf32>, vector<64x1xf32> -> vector<64x1xf32>
    %91 = arith.mulf %87, %87 : vector<64x256xf32>
    %cst_62 = arith.constant dense<0.000000e+00> : vector<64x1xf32>
    %92 = tpu.matmul %91, %89, %cst_62 {dimension_numbers = #tpu.dot_dimension_numbers<[1], [0], [0], [1], [0, 0, 1, 1], [], []>} : vector<64x256xf32>, vector<256x1xf32>, vector<64x1xf32> -> vector<64x1xf32>
    %cst_63 = arith.constant 2.560000e+02 : f32
    %93 = vector.broadcast %cst_63 : f32 to vector<64x1xf32>
    %94 = arith.mulf %93, %88 : vector<64x1xf32>
    %95 = arith.addf %90, %94 : vector<64x1xf32>
    %cst_64 = arith.constant 2.000000e+00 : f32
    %96 = vector.broadcast %cst_64 : f32 to vector<64x1xf32>
    %97 = arith.mulf %96, %88 : vector<64x1xf32>
    %98 = arith.mulf %97, %90 : vector<64x1xf32>
    %99 = arith.addf %92, %98 : vector<64x1xf32>
    %cst_65 = arith.constant 2.560000e+02 : f32
    %100 = vector.broadcast %cst_65 : f32 to vector<64x1xf32>
    %101 = arith.mulf %100, %88 : vector<64x1xf32>
    %102 = arith.mulf %101, %88 : vector<64x1xf32>
    %103 = arith.addf %99, %102 : vector<64x1xf32>
    %c0_66 = arith.constant 0 : index
    %c0_67 = arith.constant 0 : index
    %104 = vector.load %arg1[%c0_66, %c0_67] : memref<64x64xf32, #tpu.memory_space<vmem>>, vector<64x64xf32>
    %cst_68 = arith.constant dense<0.000000e+00> : vector<64x1xf32>
    %105 = tpu.matmul %104, %95, %cst_68 {dimension_numbers = #tpu.dot_dimension_numbers<[1], [0], [0], [1], [0, 0, 1, 1], [], []>} : vector<64x64xf32>, vector<64x1xf32>, vector<64x1xf32> -> vector<64x1xf32>
    %c0_69 = arith.constant 0 : index
    %c0_70 = arith.constant 0 : index
    %106 = vector.load %arg1[%c0_69, %c0_70] : memref<64x64xf32, #tpu.memory_space<vmem>>, vector<64x64xf32>
    %cst_71 = arith.constant dense<0.000000e+00> : vector<64x1xf32>
    %107 = tpu.matmul %106, %103, %cst_71 {dimension_numbers = #tpu.dot_dimension_numbers<[1], [0], [0], [1], [0, 0, 1, 1], [], []>} : vector<64x64xf32>, vector<64x1xf32>, vector<64x1xf32> -> vector<64x1xf32>
    %cst_72 = arith.constant 5.120000e+02 : f32
    %108 = vector.broadcast %cst_72 : f32 to vector<64x1xf32>
    %109 = arith.divf %105, %108 : vector<64x1xf32>
    %cst_73 = arith.constant 5.120000e+02 : f32
    %110 = vector.broadcast %cst_73 : f32 to vector<64x1xf32>
    %111 = arith.divf %107, %110 : vector<64x1xf32>
    %112 = arith.mulf %109, %109 : vector<64x1xf32>
    %113 = arith.subf %111, %112 : vector<64x1xf32>
    %cst_74 = arith.constant 9.99999974E-6 : f32
    %114 = vector.broadcast %cst_74 : f32 to vector<64x1xf32>
    %115 = arith.addf %113, %114 : vector<64x1xf32>
    %116 = math.rsqrt %115 : vector<64x1xf32>
    %c0_75 = arith.constant 0 : index
    %c0_76 = arith.constant 0 : index
    %117 = vector.load %arg5[%c0_75, %c0_76] : memref<64x1xf32, #tpu.memory_space<vmem>>, vector<64x1xf32>
    %118 = arith.mulf %116, %117 : vector<64x1xf32>
    %119 = arith.subf %88, %109 : vector<64x1xf32>
    %120 = arith.mulf %119, %118 : vector<64x1xf32>
    %c0_77 = arith.constant 0 : index
    %c0_78 = arith.constant 0 : index
    %121 = vector.load %arg6[%c0_77, %c0_78] : memref<64x1xf32, #tpu.memory_space<vmem>>, vector<64x1xf32>
    %122 = arith.addf %120, %121 : vector<64x1xf32>
    %123 = vector.broadcast %118 : vector<64x1xf32> to vector<64x256xf32>
    %124 = arith.mulf %87, %123 : vector<64x256xf32>
    %125 = vector.broadcast %122 : vector<64x1xf32> to vector<64x256xf32>
    %126 = arith.addf %124, %125 : vector<64x256xf32>
    %cst_79 = arith.constant 0.000000e+00 : f32
    %127 = vector.broadcast %cst_79 : f32 to vector<64x256xf32>
    %128 = arith.maximumf %126, %127 : vector<64x256xf32>
    %c0_80 = arith.constant 0 : index
    %c0_81 = arith.constant 0 : index
    %c0_82 = arith.constant 0 : index
    %129 = vector.load %arg7[%c0_80, %c0_81, %c0_82] : memref<1x64x256xf32, #tpu.memory_space<vmem>>, vector<1x64x256xf32>
    %130 = vector.shape_cast %129 : vector<1x64x256xf32> to vector<64x256xf32>
    %131 = vector.shape_cast %128 : vector<64x256xf32> to vector<1x64x256xf32>
    tpu.vector_store %arg7[%c0_80, %c0_81, %c0_82], %131 {strides = array<i32>} : memref<1x64x256xf32, #tpu.memory_space<vmem>>, vector<1x64x256xf32>,
    return
  }
  func.func @transform_0(%arg0: i32) -> (i32, i32) {
    %c0_i32 = arith.constant 0 : i32
    %c0_i32_0 = arith.constant 0 : i32
    %c0_i32_1 = arith.constant 0 : i32
    return %c0_i32, %c0_i32_0 : i32, i32
  }
  func.func @transform_1(%arg0: i32) -> (i32, i32, i32) {
    %c0_i32 = arith.constant 0 : i32
    %c0_i32_0 = arith.constant 0 : i32
    %c0_i32_1 = arith.constant 0 : i32
    return %arg0, %c0_i32, %c0_i32_0 : i32, i32, i32
  }
  func.func @transform_2(%arg0: i32) -> (i32, i32, i32) {
    %c0_i32 = arith.constant 0 : i32
    %c0_i32_0 = arith.constant 0 : i32
    %c0_i32_1 = arith.constant 0 : i32
    %c0_i32_2 = arith.constant 0 : i32
    return %c0_i32, %c0_i32_0, %c0_i32_1 : i32, i32, i32
  }
  func.func @transform_3(%arg0: i32) -> (i32, i32) {
    %c0_i32 = arith.constant 0 : i32
    %c0_i32_0 = arith.constant 0 : i32
    %c0_i32_1 = arith.constant 0 : i32
    return %c0_i32, %c0_i32_0 : i32, i32
  }
  func.func @transform_4(%arg0: i32) -> (i32, i32) {
    %c0_i32 = arith.constant 0 : i32
    %c0_i32_0 = arith.constant 0 : i32
    %c0_i32_1 = arith.constant 0 : i32
    return %c0_i32, %c0_i32_0 : i32, i32
  }
  func.func @transform_5(%arg0: i32) -> (i32, i32) {
    %c0_i32 = arith.constant 0 : i32
    %c0_i32_0 = arith.constant 0 : i32
    %c0_i32_1 = arith.constant 0 : i32
    return %c0_i32, %c0_i32_0 : i32, i32
  }
  func.func @transform_6(%arg0: i32) -> (i32, i32, i32) {
    %c0_i32 = arith.constant 0 : i32
    %c0_i32_0 = arith.constant 0 : i32
    %c0_i32_1 = arith.constant 0 : i32
    return %arg0, %c0_i32, %c0_i32_0 : i32, i32, i32
  }
}

</mosaic_0001>

<llo_original>
// kernel: tpu_custom_call.1
$region0: #{tpu_custom_call.1}
  #allocation0 [shape = 'u32[]', space=smem, size = 0x4, offset = 0x4, fixed_abs, tag = 'smem constant byte address 0x4 - core index']
  #allocation1 [shape = 'u32[144,128]{1,0:T(1,128)}', space=vmem, size = 0x12000, scoped, tag = 'internal scratch']
  %s0 = inlined_call_operand.vmem [shape: f32[64,64], index: 0, kind: input, shape index: {}]
  %s1 = inlined_call_operand.vmem [shape: f32[2,4,290], index: 1, kind: input, shape index: {}]
  %s2 = inlined_call_operand.vmem [shape: f32[9,64,4], index: 2, kind: input, shape index: {}]
  %s3 = inlined_call_operand.vmem [shape: f32[64,1], index: 3, kind: input, shape index: {}]
  %s4 = inlined_call_operand.vmem [shape: f32[64,1], index: 4, kind: input, shape index: {}]
  %s5 = inlined_call_operand.vmem [shape: f32[64,1], index: 5, kind: input, shape index: {}]
  %s6 = inlined_call_operand.hbm [shape: f32[2,64,256], index: 6, kind: output, shape index: {}]
  %s7 = sld [smem:[#allocation0]]
  $region57: #{tpu_custom_call.1} parent=0
    _
  %s9 = ssub.s32 1, %s7
  %s10 = scalar_select 0, %s9, %s7
  $region1: #{tpu_custom_call.1} parent=0
    #allocation2 [shape = 'u8[131072]{0}', space=vmem, size = 0x20000, scoped, tag = 'output window, operand 0']
    #allocation3 [shape = 's32[2]{0}', space=sflag, size = 0x8, scoped, tag = 'scoped memory for tpu_custom_call.1']
    %11 = vsyncpa [#allocation3], 0
    %s12 = scalar_lea.sflag [#allocation3], 1
    %13 = vsyncpa %s12, 0
    loop: start=0, step=1, limit=4
    $region2: #{tpu_custom_call.1} parent=1 // loop_pre_header
      _
    $region3: #{tpu_custom_call.1} parent=1 // loop_header
      %s15 = sphi 0, %s19
      %p16 = scmp.ge.s32.totalorder %s15, 4
      %s23 = sphi 0, %s23
      %s25 = sphi 0, %s23
      %s26 = sphi 0, %s25
      %s40 = sphi 0, %s26
      %s46 = sphi 0, %s48
      %s49 = sphi 0, %s46
      %s50 = sphi 0, %s49
      %s66 = sphi 0, %s50
      %s70 = sphi 0, %s70
      %s72 = sphi 0, %s70
      %s73 = sphi 0, %s72
      %s87 = sphi 0, %s73
      %s91 = sphi 0, %s91
      %s93 = sphi 0, %s91
      %s94 = sphi 0, %s93
      %s108 = sphi 0, %s94
      %s112 = sphi 0, %s112
      %s114 = sphi 0, %s112
      %s115 = sphi 0, %s114
      %s129 = sphi 0, %s115
      %s133 = sphi 0, %s133
      %s135 = sphi 0, %s133
      %s136 = sphi 0, %s135
      %s150 = sphi 0, %s136
      %s156 = sphi 0, %s158
      %s159 = sphi 0, %s156
      %s160 = sphi 0, %s159
      %s176 = sphi 0, %s160
    $region4: #{tpu_custom_call.1} parent=1 // loop_header_branch
      %18 = sbr.rel (%p16) target = $region8
    $region5: #{tpu_custom_call.1} parent=1 // loop_body
      %s20 = ssub.s32 %s15, 1
      %s21 = ssub.s32 %s15, 2
      %s22 = sadd.s32 %s15, 1
      %s24 = sadd.s32 %s23, 1
      %p27 = scmp.eq.s32.totalorder %s15, 1
      %p28 = scmp.ne.s32.totalorder %s23, %s25
      %p29 = scmp.eq.s32.totalorder %s15, 0
      %p30 = por %p28, %p29
      %p31 = scmp.ne.s32.totalorder %s23, %s25
      %p32 = scmp.eq.s32.totalorder %s20, 1
      %p33 = por %p31, %p32
      %p34 = scmp.ne.s32.totalorder %s25, %s26
      %p35 = scmp.eq.s32.totalorder %s20, 0
      %p36 = por %p34, %p35
      %p37 = scmp.ne.s32.totalorder %s25, %s26
      %p38 = scmp.eq.s32.totalorder %s21, 1
      %p39 = por %p37, %p38
      %p41 = scmp.ne.s32.totalorder %s26, %s40
      %p42 = scmp.eq.s32.totalorder %s21, 0
      %p43 = por %p41, %p42
      %s44 = ssub.s32 %s15, %s22
      %p45 = scmp.eq.s32.totalorder %s44, 0
      %s47 = sadd.s32 %s46, 1
      %s48 = scalar_select %p45, %s46, %s47
      %p51 = pneg %p45
      %p52 = scmp.eq.s32.totalorder %s15, 1
      %p53 = por %p51, %p52
      %p54 = scmp.ne.s32.totalorder %s46, %s49
      %p55 = scmp.eq.s32.totalorder %s15, 0
      %p56 = por %p54, %p55
      %p57 = scmp.ne.s32.totalorder %s46, %s49
      %p58 = scmp.eq.s32.totalorder %s20, 1
      %p59 = por %p57, %p58
      %p60 = scmp.ne.s32.totalorder %s49, %s50
      %p61 = scmp.eq.s32.totalorder %s20, 0
      %p62 = por %p60, %p61
      %p63 = scmp.ne.s32.totalorder %s49, %s50
      %p64 = scmp.eq.s32.totalorder %s21, 1
      %p65 = por %p63, %p64
      %p67 = scmp.ne.s32.totalorder %s50, %s66
      %p68 = scmp.eq.s32.totalorder %s21, 0
      %p69 = por %p67, %p68
      %s71 = sadd.s32 %s70, 1
      %p74 = scmp.eq.s32.totalorder %s15, 1
      %p75 = scmp.ne.s32.totalorder %s70, %s72
      %p76 = scmp.eq.s32.totalorder %s15, 0
      %p77 = por %p75, %p76
      %p78 = scmp.ne.s32.totalorder %s70, %s72
      %p79 = scmp.eq.s32.totalorder %s20, 1
      %p80 = por %p78, %p79
      %p81 = scmp.ne.s32.totalorder %s72, %s73
      %p82 = scmp.eq.s32.totalorder %s20, 0
      %p83 = por %p81, %p82
      %p84 = scmp.ne.s32.totalorder %s72, %s73
      %p85 = scmp.eq.s32.totalorder %s21, 1
      %p86 = por %p84, %p85
      %p88 = scmp.ne.s32.totalorder %s73, %s87
      %p89 = scmp.eq.s32.totalorder %s21, 0
      %p90 = por %p88, %p89
      %s92 = sadd.s32 %s91, 1
      %p95 = scmp.eq.s32.totalorder %s15, 1
      %p96 = scmp.ne.s32.totalorder %s91, %s93
      %p97 = scmp.eq.s32.totalorder %s15, 0
      %p98 = por %p96, %p97
      %p99 = scmp.ne.s32.totalorder %s91, %s93
      %p100 = scmp.eq.s32.totalorder %s20, 1
      %p101 = por %p99, %p100
      %p102 = scmp.ne.s32.totalorder %s93, %s94
      %p103 = scmp.eq.s32.totalorder %s20, 0
      %p104 = por %p102, %p103
      %p105 = scmp.ne.s32.totalorder %s93, %s94
      %p106 = scmp.eq.s32.totalorder %s21, 1
      %p107 = por %p105, %p106
      %p109 = scmp.ne.s32.totalorder %s94, %s108
      %p110 = scmp.eq.s32.totalorder %s21, 0
      %p111 = por %p109, %p110
      %s113 = sadd.s32 %s112, 1
      %p116 = scmp.eq.s32.totalorder %s15, 1
      %p117 = scmp.ne.s32.totalorder %s112, %s114
      %p118 = scmp.eq.s32.totalorder %s15, 0
      %p119 = por %p117, %p118
      %p120 = scmp.ne.s32.totalorder %s112, %s114
      %p121 = scmp.eq.s32.totalorder %s20, 1
      %p122 = por %p120, %p121
      %p123 = scmp.ne.s32.totalorder %s114, %s115
      %p124 = scmp.eq.s32.totalorder %s20, 0
      %p125 = por %p123, %p124
      %p126 = scmp.ne.s32.totalorder %s114, %s115
      %p127 = scmp.eq.s32.totalorder %s21, 1
      %p128 = por %p126, %p127
      %p130 = scmp.ne.s32.totalorder %s115, %s129
      %p131 = scmp.eq.s32.totalorder %s21, 0
      %p132 = por %p130, %p131
      %s134 = sadd.s32 %s133, 1
      %p137 = scmp.eq.s32.totalorder %s15, 1
      %p138 = scmp.ne.s32.totalorder %s133, %s135
      %p139 = scmp.eq.s32.totalorder %s15, 0
      %p140 = por %p138, %p139
      %p141 = scmp.ne.s32.totalorder %s133, %s135
      %p142 = scmp.eq.s32.totalorder %s20, 1
      %p143 = por %p141, %p142
      %p144 = scmp.ne.s32.totalorder %s135, %s136
      %p145 = scmp.eq.s32.totalorder %s20, 0
      %p146 = por %p144, %p145
      %p147 = scmp.ne.s32.totalorder %s135, %s136
      %p148 = scmp.eq.s32.totalorder %s21, 1
      %p149 = por %p147, %p148
      %p151 = scmp.ne.s32.totalorder %s136, %s150
      %p152 = scmp.eq.s32.totalorder %s21, 0
      %p153 = por %p151, %p152
      %s154 = ssub.s32 %s15, %s22
      %p155 = scmp.eq.s32.totalorder %s154, 0
      %s157 = sadd.s32 %s156, 1
      %s158 = scalar_select %p155, %s156, %s157
      %p161 = pneg %p155
      %p162 = scmp.eq.s32.totalorder %s15, 1
      %p163 = por %p161, %p162
      %p164 = scmp.ne.s32.totalorder %s156, %s159
      %p165 = scmp.eq.s32.totalorder %s15, 0
      %p166 = por %p164, %p165
      %p167 = scmp.ne.s32.totalorder %s156, %s159
      %p168 = scmp.eq.s32.totalorder %s20, 1
      %p169 = por %p167, %p168
      %p170 = scmp.ne.s32.totalorder %s159, %s160
      %p171 = scmp.eq.s32.totalorder %s20, 0
      %p172 = por %p170, %p171
      %p173 = scmp.ne.s32.totalorder %s159, %s160
      %p174 = scmp.eq.s32.totalorder %s21, 1
      %p175 = por %p173, %p174
      %p177 = scmp.ne.s32.totalorder %s160, %s176
      %p178 = scmp.eq.s32.totalorder %s21, 0
      %p179 = por %p177, %p178
      %p180 = scmp.le.s32.totalorder 1, %s15
      %p181 = scmp.lt.s32.totalorder %s15, 3
      %p182 = pnand %p180, %p181
      %p183 = pneg %p182
      // Predicated region
      $region9: #{tpu_custom_call.1} parent=5 // pred_check
        _
      $region10: #{tpu_custom_call.1} parent=5 // pred_check_branch
        %185 = sbr.rel (%p182) target = $region12
      $region11: #{tpu_custom_call.1} parent=5 // pred_region
        %s186 = ssub.s32 %s15, 1
        // Predicated region
        $region13: #{tpu_custom_call.1} parent=11 // pred_check
          %p187 = pneg %p36
        $region14: #{tpu_custom_call.1} parent=11 // pred_check_branch
          %189 = sbr.rel (%p187) target = $region16
        $region15: #{tpu_custom_call.1} parent=11 // pred_region
          _
        $region16: #{tpu_custom_call.1} parent=11 // pred_fallthru
          _
        // Predicated region
        $region17: #{tpu_custom_call.1} parent=11 // pred_check
          %p190 = pneg %p83
        $region18: #{tpu_custom_call.1} parent=11 // pred_check_branch
          %192 = sbr.rel (%p190) target = $region20
        $region19: #{tpu_custom_call.1} parent=11 // pred_region
          _
        $region20: #{tpu_custom_call.1} parent=11 // pred_fallthru
          _
        // Predicated region
        $region21: #{tpu_custom_call.1} parent=11 // pred_check
          %p193 = pneg %p104
        $region22: #{tpu_custom_call.1} parent=11 // pred_check_branch
          %195 = sbr.rel (%p193) target = $region24
        $region23: #{tpu_custom_call.1} parent=11 // pred_region
          _
        $region24: #{tpu_custom_call.1} parent=11 // pred_fallthru
          _
        // Predicated region
        $region25: #{tpu_custom_call.1} parent=11 // pred_check
          %p196 = pneg %p125
        $region26: #{tpu_custom_call.1} parent=11 // pred_check_branch
          %198 = sbr.rel (%p196) target = $region28
        $region27: #{tpu_custom_call.1} parent=11 // pred_region
          _
        $region28: #{tpu_custom_call.1} parent=11 // pred_fallthru
          _
        // Predicated region
        $region29: #{tpu_custom_call.1} parent=11 // pred_check
          %p199 = pneg %p146
        $region30: #{tpu_custom_call.1} parent=11 // pred_check_branch
          %201 = sbr.rel (%p199) target = $region32
        $region31: #{tpu_custom_call.1} parent=11 // pred_region
          _
        $region32: #{tpu_custom_call.1} parent=11 // pred_fallthru
          _
      $region12: #{tpu_custom_call.1} parent=5 // pred_fallthru
        _
      %p202 = scmp.lt.s32.totalorder %s15, 2
      // Predicated region
      $region33: #{tpu_custom_call.1} parent=5 // pred_check
        %p203 = pneg %p202
      $region34: #{tpu_custom_call.1} parent=5 // pred_check_branch
        %205 = sbr.rel (%p203) target = $region36
      $region35: #{tpu_custom_call.1} parent=5 // pred_region
        // Predicated region
        $region37: #{tpu_custom_call.1} parent=35 // pred_check
          %p206 = pneg %p56
        $region38: #{tpu_custom_call.1} parent=35 // pred_check_branch
          %208 = sbr.rel (%p206) target = $region40
        $region39: #{tpu_custom_call.1} parent=35 // pred_region
          %p209 = scmp.lt.s32.totalorder %s15, 1
          %s210 = scalar_select %p209, %s15, 1
          %s211 = smul.addr %s210, 3
          %s212 = smul.addr %s211, 4
          %s213 = scalar_lea.vmem %s1, %s212
        $region40: #{tpu_custom_call.1} parent=35 // pred_fallthru
          _
      $region36: #{tpu_custom_call.1} parent=5 // pred_fallthru
        _
      %p214 = scmp.le.s32.totalorder 1, %s15
      %p215 = scmp.lt.s32.totalorder %s15, 3
      %p216 = pnand %p214, %p215
      %p217 = pneg %p216
      // Predicated region
      $region41: #{tpu_custom_call.1} parent=5 // pred_check
        _
      $region42: #{tpu_custom_call.1} parent=5 // pred_check_branch
        %219 = sbr.rel (%p216) target = $region44
      $region43: #{tpu_custom_call.1} parent=5 // pred_region
        %s220 = ssub.s32 %s15, 1
        %p221 = pneg %p36
        %p222 = pneg %p33
        %p223 = scmp.lt.s32.totalorder %s20, 1
        %s224 = scalar_select %p223, %s20, 1
        %s225 = smul.addr %s224, 3
        %s226 = smul.addr %s225, 4
        %s227 = scalar_lea.vmem %s1, %s226
        %p228 = pneg %p62
        %p229 = pneg %p59
        %p230 = pneg %p83
        %p231 = pneg %p80
        %p232 = pneg %p104
        %p233 = pneg %p101
        %p234 = pneg %p125
        %p235 = pneg %p122
        %p236 = pneg %p146
        %p237 = pneg %p143
        %p238 = pneg %p172
        %p239 = pneg %p169
        %s240 = sand.u32 %s159, 1
        %s241 = scalar_lea.sflag [#allocation3], %s240
        %s242 = sand.u32 %s159, 1
        %s243 = smul.addr %s242, 128
        %s244 = scalar_lea.vmem [#allocation2], %s243
        %p245 = scmp.lt.s32.totalorder %s20, 1
        %s246 = scalar_select %p245, %s20, 1
        %s247 = smul.addr %s246, 3
        %s248 = smul.addr %s247, 4
        %s249 = scalar_lea.vmem %s1, %s248
        %v250 = vlaneseq
        %v251 = vand.u32 %v250, 127
        %v252 = vadd.s32 %v251, 128
        %vm253 = vcmp.lt.s32.totalorder %v251, 0
        %v254 = vsub.s32 0, %v251
        %v255 = vsel %vm253, %v254, %v251
        %v256 = vshrl.u32 %v255, 4
        %v257 = vand.u32 %v255, 15
        %v258 = vsub.s32 0, %v257
        %v259 = vsel %vm253, %v258, %v257
        %vm260 = vcmp.lt.s32.totalorder %v252, 0
        %v261 = vsub.s32 0, %v252
        %v262 = vsel %vm260, %v261, %v252
        %v263 = vshrl.u32 %v262, 4
        %v264 = vand.u32 %v262, 15
        %v265 = vsub.s32 0, %v264
        %v266 = vsel %vm260, %v265, %v264
        %vm267 = vcmp.ne.s32.totalorder %v259, 0
        %vm268 = vcmp.ne.s32.totalorder %v266, 0
        %vm269 = vcmp.lt.s32.totalorder %v259, 0
        %vm270 = vcmp.lt.s32.totalorder %v266, 0
        %vm271 = vmand %vm269, %vm267
        %vm272 = vmand %vm270, %vm268
        %v273 = vadd.s32 %v259, 16
        %v274 = vadd.s32 %v266, 16
        %v275 = vsel %vm271, %v273, %v259
        %v276 = vsel %vm272, %v274, %v266
        %vm277 = vcmp.ge.s32.totalorder %v275, 1
        %vm278 = vcmp.ge.s32.totalorder %v276, 1
        %vm279 = vcmp.lt.s32.totalorder %v275, 15
        %vm280 = vcmp.lt.s32.totalorder %v276, 15
        %v281 = vld [vmem:[%s249] sm:$0xff]
        %v283 = vcombine.high %v281, %v281
        %v285 = vsel %vm277, %v281, 0.0
        %v286 = vsel %vm278, %v283, 0.0
        %v287 = vld [vmem:[%s2] sm:$0xff]
        %v288 = vld [vmem:[%s2 + $0x8] sm:$0xff]
        %v289 = vld [vmem:[%s2 + $0x10] sm:$0xff]
        %v290 = vld [vmem:[%s2 + $0x18] sm:$0xff]
        %v291 = vld [vmem:[%s2 + $0x20] sm:$0xff]
        %v292 = vld [vmem:[%s2 + $0x28] sm:$0xff]
        %v293 = vld [vmem:[%s2 + $0x30] sm:$0xff]
        %v294 = vld [vmem:[%s2 + $0x38] sm:$0xff]
        %v295 = vld [vmem:[%s249 + $0x8] sm:$0xf]
        %s296 = scalar_lea.vmem %s2, 64
        %v297 = vld [vmem:[%s296] sm:$0xff]
        %v298 = vld [vmem:[%s296 + $0x8] sm:$0xff]
        %v299 = vld [vmem:[%s296 + $0x10] sm:$0xff]
        %v300 = vld [vmem:[%s296 + $0x18] sm:$0xff]
        %v301 = vld [vmem:[%s296 + $0x20] sm:$0xff]
        %v302 = vld [vmem:[%s296 + $0x28] sm:$0xff]
        %v303 = vld [vmem:[%s296 + $0x30] sm:$0xff]
        %v304 = vld [vmem:[%s296 + $0x38] sm:$0xff]
        %306 = vrot.lane.b32.xlu0 %v281, 127
        %v307 = vpop.permute.xlu0 %306
        %308 = vrot.lane.b32.xlu0 %v283, 127
        %v309 = vpop.permute.xlu0 %308
        %310 = vrot.lane.b32.xlu0 %v295, 127
        %v311 = vpop.permute.xlu0 %310
        %vm312 = vcmask 1039360
        %v313 = vsel %vm312, %v307, %v309
        %v314 = vsel %vm312, %v309, %v311
        %vm315 = vcmask 31744
        %v317 = vsel %vm315, %v297, 0
        %v320 = vsel %vm315, %v298, 0
        %v323 = vsel %vm315, %v299, 0
        %v326 = vsel %vm315, %v300, 0
        %v329 = vsel %vm315, %v301, 0
        %v332 = vsel %vm315, %v302, 0
        %v335 = vsel %vm315, %v303, 0
        %v338 = vsel %vm315, %v304, 0
        %vm340 = vcmask 1043456
        %v341 = vsel %vm340, %v313, 0
        %v343 = vsel %vm340, %v314, 0
        %345 = vmatprep.subr.mxu0 %v343
        %346 = vmatpush1.msra.mxu0 %v341
        %347 = vmatprep.subr.mxu0 0.0
        %348 = vmatpush1.msra.mxu0 0.0
        %349 = vmatprep.subr.mxu0 0.0
        %350 = vmatpush1.msra.mxu0 0.0
        %351 = vmatprep.subr.mxu0 0.0
        %352 = vmatpush1.msra.mxu0 0.0
        %353 = vmatprep.subr.mxu0 0.0
        %354 = vmatpush1.msra.mxu0 0.0
        %355 = vmatprep.subr.mxu0 0.0
        %356 = vmatpush1.msra.mxu0 0.0
        %357 = vmatprep.subr.mxu0 0.0
        %358 = vmatpush1.msra.mxu0 0.0
        %359 = vmatprep.subr.mxu0 0.0
        %360 = vmatpush1.msra.mxu0 0.0
        %361 = vmatprep.subr.mxu0 0.0
        %362 = vmatpush1.msra.mxu0 0.0
        %363 = vmatprep.subr.mxu0 0.0
        %364 = vmatpush1.msra.mxu0 0.0
        %365 = vmatprep.subr.mxu0 0.0
        %366 = vmatpush1.msra.mxu0 0.0
        %367 = vmatprep.subr.mxu0 0.0
        %368 = vmatpush1.msra.mxu0 0.0
        %369 = vmatprep.subr.mxu0 0.0
        %370 = vmatpush1.msra.mxu0 0.0
        %371 = vmatprep.subr.mxu0 0.0
        %372 = vmatpush1.msra.mxu0 0.0
        %373 = vmatprep.subr.mxu0 0.0
        %374 = vmatpush1.msra.mxu0 0.0
        %375 = vmatprep.subr.mxu0 0.0
        %376 = vmatpush1.msra.mxu0 0.0
        %377 = vmatprep.subr.mxu0 0.0
        %378 = vmatpush1.msra.mxu0 0.0
        %379 = vmatprep.subr.mxu0 0.0
        %380 = vmatpush1.msra.mxu0 0.0
        %381 = vmatprep.subr.mxu0 0.0
        %382 = vmatpush1.msra.mxu0 0.0
        %383 = vmatprep.subr.mxu0 0.0
        %384 = vmatpush1.msra.mxu0 0.0
        %385 = vmatprep.subr.mxu0 0.0
        %386 = vmatpush1.msra.mxu0 0.0
        %387 = vmatprep.subr.mxu0 0.0
        %388 = vmatpush1.msra.mxu0 0.0
        %389 = vmatprep.subr.mxu0 0.0
        %390 = vmatpush1.msra.mxu0 0.0
        %391 = vmatprep.subr.mxu0 0.0
        %392 = vmatpush1.msra.mxu0 0.0
        %393 = vmatprep.subr.mxu0 0.0
        %394 = vmatpush1.msra.mxu0 0.0
        %395 = vmatprep.subr.mxu0 0.0
        %396 = vmatpush1.msra.mxu0 0.0
        %397 = vmatprep.subr.mxu0 0.0
        %398 = vmatpush1.msra.mxu0 0.0
        %399 = vmatprep.subr.mxu0 0.0
        %400 = vmatpush1.msra.mxu0 0.0
        %401 = vmatprep.subr.mxu0 0.0
        %402 = vmatpush1.msra.mxu0 0.0
        %403 = vmatprep.subr.mxu0 0.0
        %404 = vmatpush1.msra.mxu0 0.0
        %405 = vmatprep.subr.mxu0 0.0
        %406 = vmatpush1.msra.mxu0 0.0
        %407 = vmatprep.subr.mxu0 0.0
        %408 = vmatpush1.msra.mxu0 0.0
        %409 = vmatprep.mubr.f32.mxu0 0.0
        %410 = vmatmul.mubr.f32.gmra.mrb[0].mxu0 %v317
        %v411 = vpop.f32.mrb[0].mxu0
        %v412 = vadd.f32 0.0, %v411
        %v413 = vpop.f32.mrb[0].mxu0
        %v414 = vadd.f32 0.0, %v413
        %415 = vmatprep.mubr.f32.mxu0 0.0
        %416 = vmatmul.mubr.f32.gmra.mrb[0].mxu0 %v320
        %v417 = vpop.f32.mrb[0].mxu0
        %v418 = vadd.f32 0.0, %v417
        %v419 = vpop.f32.mrb[0].mxu0
        %v420 = vadd.f32 0.0, %v419
        %421 = vmatprep.mubr.f32.mxu0 0.0
        %422 = vmatmul.mubr.f32.gmra.mrb[0].mxu0 %v323
        %v423 = vpop.f32.mrb[0].mxu0
        %v424 = vadd.f32 0.0, %v423
        %v425 = vpop.f32.mrb[0].mxu0
        %v426 = vadd.f32 0.0, %v425
        %427 = vmatprep.mubr.f32.mxu0 0.0
        %428 = vmatmul.mubr.f32.gmra.mrb[0].mxu0 %v326
        %v429 = vpop.f32.mrb[0].mxu0
        %v430 = vadd.f32 0.0, %v429
        %v431 = vpop.f32.mrb[0].mxu0
        %v432 = vadd.f32 0.0, %v431
        %433 = vmatprep.mubr.f32.mxu0 0.0
        %434 = vmatmul.mubr.f32.gmra.mrb[0].mxu0 %v329
        %v435 = vpop.f32.mrb[0].mxu0
        %v436 = vadd.f32 0.0, %v435
        %v437 = vpop.f32.mrb[0].mxu0
        %v438 = vadd.f32 0.0, %v437
        %439 = vmatprep.mubr.f32.mxu0 0.0
        %440 = vmatmul.mubr.f32.gmra.mrb[0].mxu0 %v332
        %v441 = vpop.f32.mrb[0].mxu0
        %v442 = vadd.f32 0.0, %v441
        %v443 = vpop.f32.mrb[0].mxu0
        %v444 = vadd.f32 0.0, %v443
        %445 = vmatprep.mubr.f32.mxu0 0.0
        %446 = vmatmul.mubr.f32.gmra.mrb[0].mxu0 %v335
        %v447 = vpop.f32.mrb[0].mxu0
        %v448 = vadd.f32 0.0, %v447
        %v449 = vpop.f32.mrb[0].mxu0
        %v450 = vadd.f32 0.0, %v449
        %451 = vmatprep.mubr.f32.mxu0 0.0
        %452 = vmatmul.mubr.f32.gmra.mrb[0].mxu0 %v338
        %v453 = vpop.f32.mrb[0].mxu0
        %v454 = vadd.f32 0.0, %v453
        %v455 = vpop.f32.mrb[0].mxu0
        %v456 = vadd.f32 0.0, %v455
        %457 = vdwg.mxu0
        %v459 = vsel %vm315, %v287, 0
        %v462 = vsel %vm315, %v288, 0
        %v465 = vsel %vm315, %v289, 0
        %v468 = vsel %vm315, %v290, 0
        %v471 = vsel %vm315, %v291, 0
        %v474 = vsel %vm315, %v292, 0
        %v477 = vsel %vm315, %v293, 0
        %v480 = vsel %vm315, %v294, 0
        %v483 = vsel %vm340, %v285, 0
        %v486 = vsel %vm340, %v286, 0
        %488 = vmatprep.subr.mxu0 %v486
        %489 = vmatpush1.msra.mxu0 %v483
        %490 = vmatprep.subr.mxu0 0.0
        %491 = vmatpush1.msra.mxu0 0.0
        %492 = vmatprep.subr.mxu0 0.0
        %493 = vmatpush1.msra.mxu0 0.0
        %494 = vmatprep.subr.mxu0 0.0
        %495 = vmatpush1.msra.mxu0 0.0
        %496 = vmatprep.subr.mxu0 0.0
        %497 = vmatpush1.msra.mxu0 0.0
        %498 = vmatprep.subr.mxu0 0.0
        %499 = vmatpush1.msra.mxu0 0.0
        %500 = vmatprep.subr.mxu0 0.0
        %501 = vmatpush1.msra.mxu0 0.0
        %502 = vmatprep.subr.mxu0 0.0
        %503 = vmatpush1.msra.mxu0 0.0
        %504 = vmatprep.subr.mxu0 0.0
        %505 = vmatpush1.msra.mxu0 0.0
        %506 = vmatprep.subr.mxu0 0.0
        %507 = vmatpush1.msra.mxu0 0.0
        %508 = vmatprep.subr.mxu0 0.0
        %509 = vmatpush1.msra.mxu0 0.0
        %510 = vmatprep.subr.mxu0 0.0
        %511 = vmatpush1.msra.mxu0 0.0
        %512 = vmatprep.subr.mxu0 0.0
        %513 = vmatpush1.msra.mxu0 0.0
        %514 = vmatprep.subr.mxu0 0.0
        %515 = vmatpush1.msra.mxu0 0.0
        %516 = vmatprep.subr.mxu0 0.0
        %517 = vmatpush1.msra.mxu0 0.0
        %518 = vmatprep.subr.mxu0 0.0
        %519 = vmatpush1.msra.mxu0 0.0
        %520 = vmatprep.subr.mxu0 0.0
        %521 = vmatpush1.msra.mxu0 0.0
        %522 = vmatprep.subr.mxu0 0.0
        %523 = vmatpush1.msra.mxu0 0.0
        %524 = vmatprep.subr.mxu0 0.0
        %525 = vmatpush1.msra.mxu0 0.0
        %526 = vmatprep.subr.mxu0 0.0
        %527 = vmatpush1.msra.mxu0 0.0
        %528 = vmatprep.subr.mxu0 0.0
        %529 = vmatpush1.msra.mxu0 0.0
        %530 = vmatprep.subr.mxu0 0.0
        %531 = vmatpush1.msra.mxu0 0.0
        %532 = vmatprep.subr.mxu0 0.0
        %533 = vmatpush1.msra.mxu0 0.0
        %534 = vmatprep.subr.mxu0 0.0
        %535 = vmatpush1.msra.mxu0 0.0
        %536 = vmatprep.subr.mxu0 0.0
        %537 = vmatpush1.msra.mxu0 0.0
        %538 = vmatprep.subr.mxu0 0.0
        %539 = vmatpush1.msra.mxu0 0.0
        %540 = vmatprep.subr.mxu0 0.0
        %541 = vmatpush1.msra.mxu0 0.0
        %542 = vmatprep.subr.mxu0 0.0
        %543 = vmatpush1.msra.mxu0 0.0
        %544 = vmatprep.subr.mxu0 0.0
        %545 = vmatpush1.msra.mxu0 0.0
        %546 = vmatprep.subr.mxu0 0.0
        %547 = vmatpush1.msra.mxu0 0.0
        %548 = vmatprep.subr.mxu0 0.0
        %549 = vmatpush1.msra.mxu0 0.0
        %550 = vmatprep.subr.mxu0 0.0
        %551 = vmatpush1.msra.mxu0 0.0
        %552 = vmatprep.mubr.f32.mxu0 0.0
        %553 = vmatmul.mubr.f32.gmra.mrb[0].mxu0 %v459
        %v554 = vpop.f32.mrb[0].mxu0
        %v555 = vadd.f32 %v412, %v554
        %v556 = vpop.f32.mrb[0].mxu0
        %v557 = vadd.f32 %v414, %v556
        %558 = vmatprep.mubr.f32.mxu0 0.0
        %559 = vmatmul.mubr.f32.gmra.mrb[0].mxu0 %v462
        %v560 = vpop.f32.mrb[0].mxu0
        %v561 = vadd.f32 %v418, %v560
        %v562 = vpop.f32.mrb[0].mxu0
        %v563 = vadd.f32 %v420, %v562
        %564 = vmatprep.mubr.f32.mxu0 0.0
        %565 = vmatmul.mubr.f32.gmra.mrb[0].mxu0 %v465
        %v566 = vpop.f32.mrb[0].mxu0
        %v567 = vadd.f32 %v424, %v566
        %v568 = vpop.f32.mrb[0].mxu0
        %v569 = vadd.f32 %v426, %v568
        %570 = vmatprep.mubr.f32.mxu0 0.0
        %571 = vmatmul.mubr.f32.gmra.mrb[0].mxu0 %v468
        %v572 = vpop.f32.mrb[0].mxu0
        %v573 = vadd.f32 %v430, %v572
        %v574 = vpop.f32.mrb[0].mxu0
        %v575 = vadd.f32 %v432, %v574
        %576 = vmatprep.mubr.f32.mxu0 0.0
        %577 = vmatmul.mubr.f32.gmra.mrb[0].mxu0 %v471
        %v578 = vpop.f32.mrb[0].mxu0
        %v579 = vadd.f32 %v436, %v578
        %v580 = vpop.f32.mrb[0].mxu0
        %v581 = vadd.f32 %v438, %v580
        %582 = vmatprep.mubr.f32.mxu0 0.0
        %583 = vmatmul.mubr.f32.gmra.mrb[0].mxu0 %v474
        %v584 = vpop.f32.mrb[0].mxu0
        %v585 = vadd.f32 %v442, %v584
        %v586 = vpop.f32.mrb[0].mxu0
        %v587 = vadd.f32 %v444, %v586
        %588 = vmatprep.mubr.f32.mxu0 0.0
        %589 = vmatmul.mubr.f32.gmra.mrb[0].mxu0 %v477
        %v590 = vpop.f32.mrb[0].mxu0
        %v591 = vadd.f32 %v448, %v590
        %v592 = vpop.f32.mrb[0].mxu0
        %v593 = vadd.f32 %v450, %v592
        %594 = vmatprep.mubr.f32.mxu0 0.0
        %595 = vmatmul.mubr.f32.gmra.mrb[0].mxu0 %v480
        %v596 = vpop.f32.mrb[0].mxu0
        %v597 = vadd.f32 %v454, %v596
        %v598 = vpop.f32.mrb[0].mxu0
        %v599 = vadd.f32 %v456, %v598
        %600 = vdwg.mxu0
        %v601 = vld [vmem:[%s249] sm:$0xff]
        %v602 = vld [vmem:[%s249 + $0x8] sm:$0xf]
        %v605 = vcombine.high %v601, %v601
        %606 = vrot.lane.b32.xlu0 %v601, 126
        %v607 = vpop.permute.xlu0 %606
        %608 = vrot.lane.b32.xlu0 %v605, 126
        %v609 = vpop.permute.xlu0 %608
        %610 = vrot.lane.b32.xlu0 %v602, 126
        %v611 = vpop.permute.xlu0 %610
        %vm612 = vcmask 1031168
        %v613 = vsel %vm612, %v607, %v609
        %v614 = vsel %vm612, %v609, %v611
        %v617 = vsel %vm279, %v613, 0.0
        %v618 = vsel %vm280, %v614, 0.0
        %s619 = scalar_lea.vmem %s2, 128
        %v620 = vld [vmem:[%s619] sm:$0xff]
        %v621 = vld [vmem:[%s619 + $0x8] sm:$0xff]
        %v622 = vld [vmem:[%s619 + $0x10] sm:$0xff]
        %v623 = vld [vmem:[%s619 + $0x18] sm:$0xff]
        %v624 = vld [vmem:[%s619 + $0x20] sm:$0xff]
        %v625 = vld [vmem:[%s619 + $0x28] sm:$0xff]
        %v626 = vld [vmem:[%s619 + $0x30] sm:$0xff]
        %v627 = vld [vmem:[%s619 + $0x38] sm:$0xff]
        %v629 = vsel %vm315, %v620, 0
        %v632 = vsel %vm315, %v621, 0
        %v635 = vsel %vm315, %v622, 0
        %v638 = vsel %vm315, %v623, 0
        %v641 = vsel %vm315, %v624, 0
        %v644 = vsel %vm315, %v625, 0
        %v647 = vsel %vm315, %v626, 0
        %v650 = vsel %vm315, %v627, 0
        %v653 = vsel %vm340, %v617, 0
        %v656 = vsel %vm340, %v618, 0
        %658 = vmatprep.subr.mxu0 %v656
        %659 = vmatpush1.msra.mxu0 %v653
        %660 = vmatprep.subr.mxu0 0.0
        %661 = vmatpush1.msra.mxu0 0.0
        %662 = vmatprep.subr.mxu0 0.0
        %663 = vmatpush1.msra.mxu0 0.0
        %664 = vmatprep.subr.mxu0 0.0
        %665 = vmatpush1.msra.mxu0 0.0
        %666 = vmatprep.subr.mxu0 0.0
        %667 = vmatpush1.msra.mxu0 0.0
        %668 = vmatprep.subr.mxu0 0.0
        %669 = vmatpush1.msra.mxu0 0.0
        %670 = vmatprep.subr.mxu0 0.0
        %671 = vmatpush1.msra.mxu0 0.0
        %672 = vmatprep.subr.mxu0 0.0
        %673 = vmatpush1.msra.mxu0 0.0
        %674 = vmatprep.subr.mxu0 0.0
        %675 = vmatpush1.msra.mxu0 0.0
        %676 = vmatprep.subr.mxu0 0.0
        %677 = vmatpush1.msra.mxu0 0.0
        %678 = vmatprep.subr.mxu0 0.0
        %679 = vmatpush1.msra.mxu0 0.0
        %680 = vmatprep.subr.mxu0 0.0
        %681 = vmatpush1.msra.mxu0 0.0
        %682 = vmatprep.subr.mxu0 0.0
        %683 = vmatpush1.msra.mxu0 0.0
        %684 = vmatprep.subr.mxu0 0.0
        %685 = vmatpush1.msra.mxu0 0.0
        %686 = vmatprep.subr.mxu0 0.0
        %687 = vmatpush1.msra.mxu0 0.0
        %688 = vmatprep.subr.mxu0 0.0
        %689 = vmatpush1.msra.mxu0 0.0
        %690 = vmatprep.subr.mxu0 0.0
        %691 = vmatpush1.msra.mxu0 0.0
        %692 = vmatprep.subr.mxu0 0.0
        %693 = vmatpush1.msra.mxu0 0.0
        %694 = vmatprep.subr.mxu0 0.0
        %695 = vmatpush1.msra.mxu0 0.0
        %696 = vmatprep.subr.mxu0 0.0
        %697 = vmatpush1.msra.mxu0 0.0
        %698 = vmatprep.subr.mxu0 0.0
        %699 = vmatpush1.msra.mxu0 0.0
        %700 = vmatprep.subr.mxu0 0.0
        %701 = vmatpush1.msra.mxu0 0.0
        %702 = vmatprep.subr.mxu0 0.0
        %703 = vmatpush1.msra.mxu0 0.0
        %704 = vmatprep.subr.mxu0 0.0
        %705 = vmatpush1.msra.mxu0 0.0
        %706 = vmatprep.subr.mxu0 0.0
        %707 = vmatpush1.msra.mxu0 0.0
        %708 = vmatprep.subr.mxu0 0.0
        %709 = vmatpush1.msra.mxu0 0.0
        %710 = vmatprep.subr.mxu0 0.0
        %711 = vmatpush1.msra.mxu0 0.0
        %712 = vmatprep.subr.mxu0 0.0
        %713 = vmatpush1.msra.mxu0 0.0
        %714 = vmatprep.subr.mxu0 0.0
        %715 = vmatpush1.msra.mxu0 0.0
        %716 = vmatprep.subr.mxu0 0.0
        %717 = vmatpush1.msra.mxu0 0.0
        %718 = vmatprep.subr.mxu0 0.0
        %719 = vmatpush1.msra.mxu0 0.0
        %720 = vmatprep.subr.mxu0 0.0
        %721 = vmatpush1.msra.mxu0 0.0
        %722 = vmatprep.mubr.f32.mxu0 0.0
        %723 = vmatmul.mubr.f32.gmra.mrb[0].mxu0 %v629
        %v724 = vpop.f32.mrb[0].mxu0
        %v725 = vadd.f32 0.0, %v724
        %v726 = vpop.f32.mrb[0].mxu0
        %v727 = vadd.f32 0.0, %v726
        %728 = vmatprep.mubr.f32.mxu0 0.0
        %729 = vmatmul.mubr.f32.gmra.mrb[0].mxu0 %v632
        %v730 = vpop.f32.mrb[0].mxu0
        %v731 = vadd.f32 0.0, %v730
        %v732 = vpop.f32.mrb[0].mxu0
        %v733 = vadd.f32 0.0, %v732
        %734 = vmatprep.mubr.f32.mxu0 0.0
        %735 = vmatmul.mubr.f32.gmra.mrb[0].mxu0 %v635
        %v736 = vpop.f32.mrb[0].mxu0
        %v737 = vadd.f32 0.0, %v736
        %v738 = vpop.f32.mrb[0].mxu0
        %v739 = vadd.f32 0.0, %v738
        %740 = vmatprep.mubr.f32.mxu0 0.0
        %741 = vmatmul.mubr.f32.gmra.mrb[0].mxu0 %v638
        %v742 = vpop.f32.mrb[0].mxu0
        %v743 = vadd.f32 0.0, %v742
        %v744 = vpop.f32.mrb[0].mxu0
        %v745 = vadd.f32 0.0, %v744
        %746 = vmatprep.mubr.f32.mxu0 0.0
        %747 = vmatmul.mubr.f32.gmra.mrb[0].mxu0 %v641
        %v748 = vpop.f32.mrb[0].mxu0
        %v749 = vadd.f32 0.0, %v748
        %v750 = vpop.f32.mrb[0].mxu0
        %v751 = vadd.f32 0.0, %v750
        %752 = vmatprep.mubr.f32.mxu0 0.0
        %753 = vmatmul.mubr.f32.gmra.mrb[0].mxu0 %v644
        %v754 = vpop.f32.mrb[0].mxu0
        %v755 = vadd.f32 0.0, %v754
        %v756 = vpop.f32.mrb[0].mxu0
        %v757 = vadd.f32 0.0, %v756
        %758 = vmatprep.mubr.f32.mxu0 0.0
        %759 = vmatmul.mubr.f32.gmra.mrb[0].mxu0 %v647
        %v760 = vpop.f32.mrb[0].mxu0
        %v761 = vadd.f32 0.0, %v760
        %v762 = vpop.f32.mrb[0].mxu0
        %v763 = vadd.f32 0.0, %v762
        %764 = vmatprep.mubr.f32.mxu0 0.0
        %765 = vmatmul.mubr.f32.gmra.mrb[0].mxu0 %v650
        %v766 = vpop.f32.mrb[0].mxu0
        %v767 = vadd.f32 0.0, %v766
        %v768 = vpop.f32.mrb[0].mxu0
        %v769 = vadd.f32 0.0, %v768
        %770 = vdwg.mxu0
        %v771 = vadd.f32 %v555, %v725
        %v772 = vadd.f32 %v557, %v727
        %v773 = vadd.f32 %v561, %v731
        %v774 = vadd.f32 %v563, %v733
        %v775 = vadd.f32 %v567, %v737
        %v776 = vadd.f32 %v569, %v739
        %v777 = vadd.f32 %v573, %v743
        %v778 = vadd.f32 %v575, %v745
        %v779 = vadd.f32 %v579, %v749
        %v780 = vadd.f32 %v581, %v751
        %v781 = vadd.f32 %v585, %v755
        %v782 = vadd.f32 %v587, %v757
        %v783 = vadd.f32 %v591, %v761
        %v784 = vadd.f32 %v593, %v763
        %v785 = vadd.f32 %v597, %v767
        %v786 = vadd.f32 %v599, %v769
        %v787 = vld [vmem:[%s249] sm:$0xff]
        %v788 = vld [vmem:[%s249 + $0x8] sm:$0xf]
        %v791 = vcombine.high %v787, %v787
        %792 = vrot.lane.b32.xlu0 %v787, 112
        %v793 = vpop.permute.xlu0 %792
        %794 = vrot.lane.b32.xlu0 %v791, 112
        %v795 = vpop.permute.xlu0 %794
        %796 = vrot.lane.b32.xlu0 %v788, 112
        %v797 = vpop.permute.xlu0 %796
        %vm798 = vcmask 916480
        %v799 = vsel %vm798, %v793, %v795
        %v800 = vsel %vm798, %v795, %v797
        %v803 = vsel %vm277, %v799, 0.0
        %v804 = vsel %vm278, %v800, 0.0
        %s805 = scalar_lea.vmem %s2, 192
        %v806 = vld [vmem:[%s805] sm:$0xff]
        %v807 = vld [vmem:[%s805 + $0x8] sm:$0xff]
        %v808 = vld [vmem:[%s805 + $0x10] sm:$0xff]
        %v809 = vld [vmem:[%s805 + $0x18] sm:$0xff]
        %v810 = vld [vmem:[%s805 + $0x20] sm:$0xff]
        %v811 = vld [vmem:[%s805 + $0x28] sm:$0xff]
        %v812 = vld [vmem:[%s805 + $0x30] sm:$0xff]
        %v813 = vld [vmem:[%s805 + $0x38] sm:$0xff]
        %v815 = vsel %vm315, %v806, 0
        %v818 = vsel %vm315, %v807, 0
        %v821 = vsel %vm315, %v808, 0
        %v824 = vsel %vm315, %v809, 0
        %v827 = vsel %vm315, %v810, 0
        %v830 = vsel %vm315, %v811, 0
        %v833 = vsel %vm315, %v812, 0
        %v836 = vsel %vm315, %v813, 0
        %v839 = vsel %vm340, %v803, 0
        %v842 = vsel %vm340, %v804, 0
        %844 = vmatprep.subr.mxu0 %v842
        %845 = vmatpush1.msra.mxu0 %v839
        %846 = vmatprep.subr.mxu0 0.0
        %847 = vmatpush1.msra.mxu0 0.0
        %848 = vmatprep.subr.mxu0 0.0
        %849 = vmatpush1.msra.mxu0 0.0
        %850 = vmatprep.subr.mxu0 0.0
        %851 = vmatpush1.msra.mxu0 0.0
        %852 = vmatprep.subr.mxu0 0.0
        %853 = vmatpush1.msra.mxu0 0.0
        %854 = vmatprep.subr.mxu0 0.0
        %855 = vmatpush1.msra.mxu0 0.0
        %856 = vmatprep.subr.mxu0 0.0
        %857 = vmatpush1.msra.mxu0 0.0
        %858 = vmatprep.subr.mxu0 0.0
        %859 = vmatpush1.msra.mxu0 0.0
        %860 = vmatprep.subr.mxu0 0.0
        %861 = vmatpush1.msra.mxu0 0.0
        %862 = vmatprep.subr.mxu0 0.0
        %863 = vmatpush1.msra.mxu0 0.0
        %864 = vmatprep.subr.mxu0 0.0
        %865 = vmatpush1.msra.mxu0 0.0
        %866 = vmatprep.subr.mxu0 0.0
        %867 = vmatpush1.msra.mxu0 0.0
        %868 = vmatprep.subr.mxu0 0.0
        %869 = vmatpush1.msra.mxu0 0.0
        %870 = vmatprep.subr.mxu0 0.0
        %871 = vmatpush1.msra.mxu0 0.0
        %872 = vmatprep.subr.mxu0 0.0
        %873 = vmatpush1.msra.mxu0 0.0
        %874 = vmatprep.subr.mxu0 0.0
        %875 = vmatpush1.msra.mxu0 0.0
        %876 = vmatprep.subr.mxu0 0.0
        %877 = vmatpush1.msra.mxu0 0.0
        %878 = vmatprep.subr.mxu0 0.0
        %879 = vmatpush1.msra.mxu0 0.0
        %880 = vmatprep.subr.mxu0 0.0
        %881 = vmatpush1.msra.mxu0 0.0
        %882 = vmatprep.subr.mxu0 0.0
        %883 = vmatpush1.msra.mxu0 0.0
        %884 = vmatprep.subr.mxu0 0.0
        %885 = vmatpush1.msra.mxu0 0.0
        %886 = vmatprep.subr.mxu0 0.0
        %887 = vmatpush1.msra.mxu0 0.0
        %888 = vmatprep.subr.mxu0 0.0
        %889 = vmatpush1.msra.mxu0 0.0
        %890 = vmatprep.subr.mxu0 0.0
        %891 = vmatpush1.msra.mxu0 0.0
        %892 = vmatprep.subr.mxu0 0.0
        %893 = vmatpush1.msra.mxu0 0.0
        %894 = vmatprep.subr.mxu0 0.0
        %895 = vmatpush1.msra.mxu0 0.0
        %896 = vmatprep.subr.mxu0 0.0
        %897 = vmatpush1.msra.mxu0 0.0
        %898 = vmatprep.subr.mxu0 0.0
        %899 = vmatpush1.msra.mxu0 0.0
        %900 = vmatprep.subr.mxu0 0.0
        %901 = vmatpush1.msra.mxu0 0.0
        %902 = vmatprep.subr.mxu0 0.0
        %903 = vmatpush1.msra.mxu0 0.0
        %904 = vmatprep.subr.mxu0 0.0
        %905 = vmatpush1.msra.mxu0 0.0
        %906 = vmatprep.subr.mxu0 0.0
        %907 = vmatpush1.msra.mxu0 0.0
        %908 = vmatprep.mubr.f32.mxu0 0.0
        %909 = vmatmul.mubr.f32.gmra.mrb[0].mxu0 %v815
        %v910 = vpop.f32.mrb[0].mxu0
        %v911 = vadd.f32 0.0, %v910
        %v912 = vpop.f32.mrb[0].mxu0
        %v913 = vadd.f32 0.0, %v912
        %914 = vmatprep.mubr.f32.mxu0 0.0
        %915 = vmatmul.mubr.f32.gmra.mrb[0].mxu0 %v818
        %v916 = vpop.f32.mrb[0].mxu0
        %v917 = vadd.f32 0.0, %v916
        %v918 = vpop.f32.mrb[0].mxu0
        %v919 = vadd.f32 0.0, %v918
        %920 = vmatprep.mubr.f32.mxu0 0.0
        %921 = vmatmul.mubr.f32.gmra.mrb[0].mxu0 %v821
        %v922 = vpop.f32.mrb[0].mxu0
        %v923 = vadd.f32 0.0, %v922
        %v924 = vpop.f32.mrb[0].mxu0
        %v925 = vadd.f32 0.0, %v924
        %926 = vmatprep.mubr.f32.mxu0 0.0
        %927 = vmatmul.mubr.f32.gmra.mrb[0].mxu0 %v824
        %v928 = vpop.f32.mrb[0].mxu0
        %v929 = vadd.f32 0.0, %v928
        %v930 = vpop.f32.mrb[0].mxu0
        %v931 = vadd.f32 0.0, %v930
        %932 = vmatprep.mubr.f32.mxu0 0.0
        %933 = vmatmul.mubr.f32.gmra.mrb[0].mxu0 %v827
        %v934 = vpop.f32.mrb[0].mxu0
        %v935 = vadd.f32 0.0, %v934
        %v936 = vpop.f32.mrb[0].mxu0
        %v937 = vadd.f32 0.0, %v936
        %938 = vmatprep.mubr.f32.mxu0 0.0
        %939 = vmatmul.mubr.f32.gmra.mrb[0].mxu0 %v830
        %v940 = vpop.f32.mrb[0].mxu0
        %v941 = vadd.f32 0.0, %v940
        %v942 = vpop.f32.mrb[0].mxu0
        %v943 = vadd.f32 0.0, %v942
        %944 = vmatprep.mubr.f32.mxu0 0.0
        %945 = vmatmul.mubr.f32.gmra.mrb[0].mxu0 %v833
        %v946 = vpop.f32.mrb[0].mxu0
        %v947 = vadd.f32 0.0, %v946
        %v948 = vpop.f32.mrb[0].mxu0
        %v949 = vadd.f32 0.0, %v948
        %950 = vmatprep.mubr.f32.mxu0 0.0
        %951 = vmatmul.mubr.f32.gmra.mrb[0].mxu0 %v836
        %v952 = vpop.f32.mrb[0].mxu0
        %v953 = vadd.f32 0.0, %v952
        %v954 = vpop.f32.mrb[0].mxu0
        %v955 = vadd.f32 0.0, %v954
        %956 = vdwg.mxu0
        %v957 = vadd.f32 %v771, %v911
        %v958 = vadd.f32 %v772, %v913
        %v959 = vadd.f32 %v773, %v917
        %v960 = vadd.f32 %v774, %v919
        %v961 = vadd.f32 %v775, %v923
        %v962 = vadd.f32 %v776, %v925
        %v963 = vadd.f32 %v777, %v929
        %v964 = vadd.f32 %v778, %v931
        %v965 = vadd.f32 %v779, %v935
        %v966 = vadd.f32 %v780, %v937
        %v967 = vadd.f32 %v781, %v941
        %v968 = vadd.f32 %v782, %v943
        %v969 = vadd.f32 %v783, %v947
        %v970 = vadd.f32 %v784, %v949
        %v971 = vadd.f32 %v785, %v953
        %v972 = vadd.f32 %v786, %v955
        %v973 = vld [vmem:[%s249] sm:$0xff]
        %v974 = vld [vmem:[%s249 + $0x8] sm:$0xf]
        %s975 = scalar_lea.vmem %s2, 256
        %v976 = vld [vmem:[%s975] sm:$0xff]
        %v977 = vld [vmem:[%s975 + $0x8] sm:$0xff]
        %v978 = vld [vmem:[%s975 + $0x10] sm:$0xff]
        %v979 = vld [vmem:[%s975 + $0x18] sm:$0xff]
        %v980 = vld [vmem:[%s975 + $0x20] sm:$0xff]
        %v981 = vld [vmem:[%s975 + $0x28] sm:$0xff]
        %v982 = vld [vmem:[%s975 + $0x30] sm:$0xff]
        %v983 = vld [vmem:[%s975 + $0x38] sm:$0xff]
        %v986 = vcombine.high %v973, %v973
        %987 = vrot.lane.b32.xlu0 %v973, 111
        %v988 = vpop.permute.xlu0 %987
        %989 = vrot.lane.b32.xlu0 %v986, 111
        %v990 = vpop.permute.xlu0 %989
        %991 = vrot.lane.b32.xlu0 %v974, 111
        %v992 = vpop.permute.xlu0 %991
        %vm993 = vcmask 908288
        %v994 = vsel %vm993, %v988, %v990
        %v995 = vsel %vm993, %v990, %v992
        %v997 = vsel %vm315, %v976, 0
        %v1000 = vsel %vm315, %v977, 0
        %v1003 = vsel %vm315, %v978, 0
        %v1006 = vsel %vm315, %v979, 0
        %v1009 = vsel %vm315, %v980, 0
        %v1012 = vsel %vm315, %v981, 0
        %v1015 = vsel %vm315, %v982, 0
        %v1018 = vsel %vm315, %v983, 0
        %v1020 = vsel %vm340, %v994, 0
        %v1022 = vsel %vm340, %v995, 0
        %1024 = vmatprep.subr.mxu0 %v1022
        %1025 = vmatpush1.msra.mxu0 %v1020
        %1026 = vmatprep.subr.mxu0 0.0
        %1027 = vmatpush1.msra.mxu0 0.0
        %1028 = vmatprep.subr.mxu0 0.0
        %1029 = vmatpush1.msra.mxu0 0.0
        %1030 = vmatprep.subr.mxu0 0.0
        %1031 = vmatpush1.msra.mxu0 0.0
        %1032 = vmatprep.subr.mxu0 0.0
        %1033 = vmatpush1.msra.mxu0 0.0
        %1034 = vmatprep.subr.mxu0 0.0
        %1035 = vmatpush1.msra.mxu0 0.0
        %1036 = vmatprep.subr.mxu0 0.0
        %1037 = vmatpush1.msra.mxu0 0.0
        %1038 = vmatprep.subr.mxu0 0.0
        %1039 = vmatpush1.msra.mxu0 0.0
        %1040 = vmatprep.subr.mxu0 0.0
        %1041 = vmatpush1.msra.mxu0 0.0
        %1042 = vmatprep.subr.mxu0 0.0
        %1043 = vmatpush1.msra.mxu0 0.0
        %1044 = vmatprep.subr.mxu0 0.0
        %1045 = vmatpush1.msra.mxu0 0.0
        %1046 = vmatprep.subr.mxu0 0.0
        %1047 = vmatpush1.msra.mxu0 0.0
        %1048 = vmatprep.subr.mxu0 0.0
        %1049 = vmatpush1.msra.mxu0 0.0
        %1050 = vmatprep.subr.mxu0 0.0
        %1051 = vmatpush1.msra.mxu0 0.0
        %1052 = vmatprep.subr.mxu0 0.0
        %1053 = vmatpush1.msra.mxu0 0.0
        %1054 = vmatprep.subr.mxu0 0.0
        %1055 = vmatpush1.msra.mxu0 0.0
        %1056 = vmatprep.subr.mxu0 0.0
        %1057 = vmatpush1.msra.mxu0 0.0
        %1058 = vmatprep.subr.mxu0 0.0
        %1059 = vmatpush1.msra.mxu0 0.0
        %1060 = vmatprep.subr.mxu0 0.0
        %1061 = vmatpush1.msra.mxu0 0.0
        %1062 = vmatprep.subr.mxu0 0.0
        %1063 = vmatpush1.msra.mxu0 0.0
        %1064 = vmatprep.subr.mxu0 0.0
        %1065 = vmatpush1.msra.mxu0 0.0
        %1066 = vmatprep.subr.mxu0 0.0
        %1067 = vmatpush1.msra.mxu0 0.0
        %1068 = vmatprep.subr.mxu0 0.0
        %1069 = vmatpush1.msra.mxu0 0.0
        %1070 = vmatprep.subr.mxu0 0.0
        %1071 = vmatpush1.msra.mxu0 0.0
        %1072 = vmatprep.subr.mxu0 0.0
        %1073 = vmatpush1.msra.mxu0 0.0
        %1074 = vmatprep.subr.mxu0 0.0
        %1075 = vmatpush1.msra.mxu0 0.0
        %1076 = vmatprep.subr.mxu0 0.0
        %1077 = vmatpush1.msra.mxu0 0.0
        %1078 = vmatprep.subr.mxu0 0.0
        %1079 = vmatpush1.msra.mxu0 0.0
        %1080 = vmatprep.subr.mxu0 0.0
        %1081 = vmatpush1.msra.mxu0 0.0
        %1082 = vmatprep.subr.mxu0 0.0
        %1083 = vmatpush1.msra.mxu0 0.0
        %1084 = vmatprep.subr.mxu0 0.0
        %1085 = vmatpush1.msra.mxu0 0.0
        %1086 = vmatprep.subr.mxu0 0.0
        %1087 = vmatpush1.msra.mxu0 0.0
        %1088 = vmatprep.mubr.f32.mxu0 0.0
        %1089 = vmatmul.mubr.f32.gmra.mrb[0].mxu0 %v997
        %v1090 = vpop.f32.mrb[0].mxu0
        %v1091 = vadd.f32 0.0, %v1090
        %v1092 = vpop.f32.mrb[0].mxu0
        %v1093 = vadd.f32 0.0, %v1092
        %1094 = vmatprep.mubr.f32.mxu0 0.0
        %1095 = vmatmul.mubr.f32.gmra.mrb[0].mxu0 %v1000
        %v1096 = vpop.f32.mrb[0].mxu0
        %v1097 = vadd.f32 0.0, %v1096
        %v1098 = vpop.f32.mrb[0].mxu0
        %v1099 = vadd.f32 0.0, %v1098
        %1100 = vmatprep.mubr.f32.mxu0 0.0
        %1101 = vmatmul.mubr.f32.gmra.mrb[0].mxu0 %v1003
        %v1102 = vpop.f32.mrb[0].mxu0
        %v1103 = vadd.f32 0.0, %v1102
        %v1104 = vpop.f32.mrb[0].mxu0
        %v1105 = vadd.f32 0.0, %v1104
        %1106 = vmatprep.mubr.f32.mxu0 0.0
        %1107 = vmatmul.mubr.f32.gmra.mrb[0].mxu0 %v1006
        %v1108 = vpop.f32.mrb[0].mxu0
        %v1109 = vadd.f32 0.0, %v1108
        %v1110 = vpop.f32.mrb[0].mxu0
        %v1111 = vadd.f32 0.0, %v1110
        %1112 = vmatprep.mubr.f32.mxu0 0.0
        %1113 = vmatmul.mubr.f32.gmra.mrb[0].mxu0 %v1009
        %v1114 = vpop.f32.mrb[0].mxu0
        %v1115 = vadd.f32 0.0, %v1114
        %v1116 = vpop.f32.mrb[0].mxu0
        %v1117 = vadd.f32 0.0, %v1116
        %1118 = vmatprep.mubr.f32.mxu0 0.0
        %1119 = vmatmul.mubr.f32.gmra.mrb[0].mxu0 %v1012
        %v1120 = vpop.f32.mrb[0].mxu0
        %v1121 = vadd.f32 0.0, %v1120
        %v1122 = vpop.f32.mrb[0].mxu0
        %v1123 = vadd.f32 0.0, %v1122
        %1124 = vmatprep.mubr.f32.mxu0 0.0
        %1125 = vmatmul.mubr.f32.gmra.mrb[0].mxu0 %v1015
        %v1126 = vpop.f32.mrb[0].mxu0
        %v1127 = vadd.f32 0.0, %v1126
        %v1128 = vpop.f32.mrb[0].mxu0
        %v1129 = vadd.f32 0.0, %v1128
        %1130 = vmatprep.mubr.f32.mxu0 0.0
        %1131 = vmatmul.mubr.f32.gmra.mrb[0].mxu0 %v1018
        %v1132 = vpop.f32.mrb[0].mxu0
        %v1133 = vadd.f32 0.0, %v1132
        %v1134 = vpop.f32.mrb[0].mxu0
        %v1135 = vadd.f32 0.0, %v1134
        %1136 = vdwg.mxu0
        %v1137 = vadd.f32 %v957, %v1091
        %v1138 = vadd.f32 %v958, %v1093
        %v1139 = vadd.f32 %v959, %v1097
        %v1140 = vadd.f32 %v960, %v1099
        %v1141 = vadd.f32 %v961, %v1103
        %v1142 = vadd.f32 %v962, %v1105
        %v1143 = vadd.f32 %v963, %v1109
        %v1144 = vadd.f32 %v964, %v1111
        %v1145 = vadd.f32 %v965, %v1115
        %v1146 = vadd.f32 %v966, %v1117
        %v1147 = vadd.f32 %v967, %v1121
        %v1148 = vadd.f32 %v968, %v1123
        %v1149 = vadd.f32 %v969, %v1127
        %v1150 = vadd.f32 %v970, %v1129
        %v1151 = vadd.f32 %v971, %v1133
        %v1152 = vadd.f32 %v972, %v1135
        %v1153 = vld [vmem:[%s249] sm:$0xff]
        %v1154 = vld [vmem:[%s249 + $0x8] sm:$0xf]
        %v1157 = vcombine.high %v1153, %v1153
        %1158 = vrot.lane.b32.xlu0 %v1153, 110
        %v1159 = vpop.permute.xlu0 %1158
        %1160 = vrot.lane.b32.xlu0 %v1157, 110
        %v1161 = vpop.permute.xlu0 %1160
        %1162 = vrot.lane.b32.xlu0 %v1154, 110
        %v1163 = vpop.permute.xlu0 %1162
        %vm1164 = vcmask 900096
        %v1165 = vsel %vm1164, %v1159, %v1161
        %v1166 = vsel %vm1164, %v1161, %v1163
        %v1169 = vsel %vm279, %v1165, 0.0
        %v1170 = vsel %vm280, %v1166, 0.0
        %s1171 = scalar_lea.vmem %s2, 320
        %v1172 = vld [vmem:[%s1171] sm:$0xff]
        %v1173 = vld [vmem:[%s1171 + $0x8] sm:$0xff]
        %v1174 = vld [vmem:[%s1171 + $0x10] sm:$0xff]
        %v1175 = vld [vmem:[%s1171 + $0x18] sm:$0xff]
        %v1176 = vld [vmem:[%s1171 + $0x20] sm:$0xff]
        %v1177 = vld [vmem:[%s1171 + $0x28] sm:$0xff]
        %v1178 = vld [vmem:[%s1171 + $0x30] sm:$0xff]
        %v1179 = vld [vmem:[%s1171 + $0x38] sm:$0xff]
        %v1181 = vsel %vm315, %v1172, 0
        %v1184 = vsel %vm315, %v1173, 0
        %v1187 = vsel %vm315, %v1174, 0
        %v1190 = vsel %vm315, %v1175, 0
        %v1193 = vsel %vm315, %v1176, 0
        %v1196 = vsel %vm315, %v1177, 0
        %v1199 = vsel %vm315, %v1178, 0
        %v1202 = vsel %vm315, %v1179, 0
        %v1205 = vsel %vm340, %v1169, 0
        %v1208 = vsel %vm340, %v1170, 0
        %1210 = vmatprep.subr.mxu0 %v1208
        %1211 = vmatpush1.msra.mxu0 %v1205
        %1212 = vmatprep.subr.mxu0 0.0
        %1213 = vmatpush1.msra.mxu0 0.0
        %1214 = vmatprep.subr.mxu0 0.0
        %1215 = vmatpush1.msra.mxu0 0.0
        %1216 = vmatprep.subr.mxu0 0.0
        %1217 = vmatpush1.msra.mxu0 0.0
        %1218 = vmatprep.subr.mxu0 0.0
        %1219 = vmatpush1.msra.mxu0 0.0
        %1220 = vmatprep.subr.mxu0 0.0
        %1221 = vmatpush1.msra.mxu0 0.0
        %1222 = vmatprep.subr.mxu0 0.0
        %1223 = vmatpush1.msra.mxu0 0.0
        %1224 = vmatprep.subr.mxu0 0.0
        %1225 = vmatpush1.msra.mxu0 0.0
        %1226 = vmatprep.subr.mxu0 0.0
        %1227 = vmatpush1.msra.mxu0 0.0
        %1228 = vmatprep.subr.mxu0 0.0
        %1229 = vmatpush1.msra.mxu0 0.0
        %1230 = vmatprep.subr.mxu0 0.0
        %1231 = vmatpush1.msra.mxu0 0.0
        %1232 = vmatprep.subr.mxu0 0.0
        %1233 = vmatpush1.msra.mxu0 0.0
        %1234 = vmatprep.subr.mxu0 0.0
        %1235 = vmatpush1.msra.mxu0 0.0
        %1236 = vmatprep.subr.mxu0 0.0
        %1237 = vmatpush1.msra.mxu0 0.0
        %1238 = vmatprep.subr.mxu0 0.0
        %1239 = vmatpush1.msra.mxu0 0.0
        %1240 = vmatprep.subr.mxu0 0.0
        %1241 = vmatpush1.msra.mxu0 0.0
        %1242 = vmatprep.subr.mxu0 0.0
        %1243 = vmatpush1.msra.mxu0 0.0
        %1244 = vmatprep.subr.mxu0 0.0
        %1245 = vmatpush1.msra.mxu0 0.0
        %1246 = vmatprep.subr.mxu0 0.0
        %1247 = vmatpush1.msra.mxu0 0.0
        %1248 = vmatprep.subr.mxu0 0.0
        %1249 = vmatpush1.msra.mxu0 0.0
        %1250 = vmatprep.subr.mxu0 0.0
        %1251 = vmatpush1.msra.mxu0 0.0
        %1252 = vmatprep.subr.mxu0 0.0
        %1253 = vmatpush1.msra.mxu0 0.0
        %1254 = vmatprep.subr.mxu0 0.0
        %1255 = vmatpush1.msra.mxu0 0.0
        %1256 = vmatprep.subr.mxu0 0.0
        %1257 = vmatpush1.msra.mxu0 0.0
        %1258 = vmatprep.subr.mxu0 0.0
        %1259 = vmatpush1.msra.mxu0 0.0
        %1260 = vmatprep.subr.mxu0 0.0
        %1261 = vmatpush1.msra.mxu0 0.0
        %1262 = vmatprep.subr.mxu0 0.0
        %1263 = vmatpush1.msra.mxu0 0.0
        %1264 = vmatprep.subr.mxu0 0.0
        %1265 = vmatpush1.msra.mxu0 0.0
        %1266 = vmatprep.subr.mxu0 0.0
        %1267 = vmatpush1.msra.mxu0 0.0
        %1268 = vmatprep.subr.mxu0 0.0
        %1269 = vmatpush1.msra.mxu0 0.0
        %1270 = vmatprep.subr.mxu0 0.0
        %1271 = vmatpush1.msra.mxu0 0.0
        %1272 = vmatprep.subr.mxu0 0.0
        %1273 = vmatpush1.msra.mxu0 0.0
        %1274 = vmatprep.mubr.f32.mxu0 0.0
        %1275 = vmatmul.mubr.f32.gmra.mrb[0].mxu0 %v1181
        %v1276 = vpop.f32.mrb[0].mxu0
        %v1277 = vadd.f32 0.0, %v1276
        %v1278 = vpop.f32.mrb[0].mxu0
        %v1279 = vadd.f32 0.0, %v1278
        %1280 = vmatprep.mubr.f32.mxu0 0.0
        %1281 = vmatmul.mubr.f32.gmra.mrb[0].mxu0 %v1184
        %v1282 = vpop.f32.mrb[0].mxu0
        %v1283 = vadd.f32 0.0, %v1282
        %v1284 = vpop.f32.mrb[0].mxu0
        %v1285 = vadd.f32 0.0, %v1284
        %1286 = vmatprep.mubr.f32.mxu0 0.0
        %1287 = vmatmul.mubr.f32.gmra.mrb[0].mxu0 %v1187
        %v1288 = vpop.f32.mrb[0].mxu0
        %v1289 = vadd.f32 0.0, %v1288
        %v1290 = vpop.f32.mrb[0].mxu0
        %v1291 = vadd.f32 0.0, %v1290
        %1292 = vmatprep.mubr.f32.mxu0 0.0
        %1293 = vmatmul.mubr.f32.gmra.mrb[0].mxu0 %v1190
        %v1294 = vpop.f32.mrb[0].mxu0
        %v1295 = vadd.f32 0.0, %v1294
        %v1296 = vpop.f32.mrb[0].mxu0
        %v1297 = vadd.f32 0.0, %v1296
        %1298 = vmatprep.mubr.f32.mxu0 0.0
        %1299 = vmatmul.mubr.f32.gmra.mrb[0].mxu0 %v1193
        %v1300 = vpop.f32.mrb[0].mxu0
        %v1301 = vadd.f32 0.0, %v1300
        %v1302 = vpop.f32.mrb[0].mxu0
        %v1303 = vadd.f32 0.0, %v1302
        %1304 = vmatprep.mubr.f32.mxu0 0.0
        %1305 = vmatmul.mubr.f32.gmra.mrb[0].mxu0 %v1196
        %v1306 = vpop.f32.mrb[0].mxu0
        %v1307 = vadd.f32 0.0, %v1306
        %v1308 = vpop.f32.mrb[0].mxu0
        %v1309 = vadd.f32 0.0, %v1308
        %1310 = vmatprep.mubr.f32.mxu0 0.0
        %1311 = vmatmul.mubr.f32.gmra.mrb[0].mxu0 %v1199
        %v1312 = vpop.f32.mrb[0].mxu0
        %v1313 = vadd.f32 0.0, %v1312
        %v1314 = vpop.f32.mrb[0].mxu0
        %v1315 = vadd.f32 0.0, %v1314
        %1316 = vmatprep.mubr.f32.mxu0 0.0
        %1317 = vmatmul.mubr.f32.gmra.mrb[0].mxu0 %v1202
        %v1318 = vpop.f32.mrb[0].mxu0
        %v1319 = vadd.f32 0.0, %v1318
        %v1320 = vpop.f32.mrb[0].mxu0
        %v1321 = vadd.f32 0.0, %v1320
        %1322 = vdwg.mxu0
        %v1323 = vadd.f32 %v1137, %v1277
        %v1324 = vadd.f32 %v1138, %v1279
        %v1325 = vadd.f32 %v1139, %v1283
        %v1326 = vadd.f32 %v1140, %v1285
        %v1327 = vadd.f32 %v1141, %v1289
        %v1328 = vadd.f32 %v1142, %v1291
        %v1329 = vadd.f32 %v1143, %v1295
        %v1330 = vadd.f32 %v1144, %v1297
        %v1331 = vadd.f32 %v1145, %v1301
        %v1332 = vadd.f32 %v1146, %v1303
        %v1333 = vadd.f32 %v1147, %v1307
        %v1334 = vadd.f32 %v1148, %v1309
        %v1335 = vadd.f32 %v1149, %v1313
        %v1336 = vadd.f32 %v1150, %v1315
        %v1337 = vadd.f32 %v1151, %v1319
        %v1338 = vadd.f32 %v1152, %v1321
        %v1339 = vld [vmem:[%s249] sm:$0xff]
        %v1340 = vld [vmem:[%s249 + $0x8] sm:$0xf]
        %v1343 = vcombine.high %v1339, %v1339
        %1344 = vrot.lane.b32.xlu0 %v1339, 96
        %v1345 = vpop.permute.xlu0 %1344
        %1346 = vrot.lane.b32.xlu0 %v1343, 96
        %v1347 = vpop.permute.xlu0 %1346
        %1348 = vrot.lane.b32.xlu0 %v1340, 96
        %v1349 = vpop.permute.xlu0 %1348
        %vm1350 = vcmask 785408
        %v1351 = vsel %vm1350, %v1345, %v1347
        %v1352 = vsel %vm1350, %v1347, %v1349
        %v1355 = vsel %vm277, %v1351, 0.0
        %v1356 = vsel %vm278, %v1352, 0.0
        %s1357 = scalar_lea.vmem %s2, 384
        %v1358 = vld [vmem:[%s1357] sm:$0xff]
        %v1359 = vld [vmem:[%s1357 + $0x8] sm:$0xff]
        %v1360 = vld [vmem:[%s1357 + $0x10] sm:$0xff]
        %v1361 = vld [vmem:[%s1357 + $0x18] sm:$0xff]
        %v1362 = vld [vmem:[%s1357 + $0x20] sm:$0xff]
        %v1363 = vld [vmem:[%s1357 + $0x28] sm:$0xff]
        %v1364 = vld [vmem:[%s1357 + $0x30] sm:$0xff]
        %v1365 = vld [vmem:[%s1357 + $0x38] sm:$0xff]
        %v1367 = vsel %vm315, %v1358, 0
        %v1370 = vsel %vm315, %v1359, 0
        %v1373 = vsel %vm315, %v1360, 0
        %v1376 = vsel %vm315, %v1361, 0
        %v1379 = vsel %vm315, %v1362, 0
        %v1382 = vsel %vm315, %v1363, 0
        %v1385 = vsel %vm315, %v1364, 0
        %v1388 = vsel %vm315, %v1365, 0
        %v1391 = vsel %vm340, %v1355, 0
        %v1394 = vsel %vm340, %v1356, 0
        %1396 = vmatprep.subr.mxu0 %v1394
        %1397 = vmatpush1.msra.mxu0 %v1391
        %1398 = vmatprep.subr.mxu0 0.0
        %1399 = vmatpush1.msra.mxu0 0.0
        %1400 = vmatprep.subr.mxu0 0.0
        %1401 = vmatpush1.msra.mxu0 0.0
        %1402 = vmatprep.subr.mxu0 0.0
        %1403 = vmatpush1.msra.mxu0 0.0
        %1404 = vmatprep.subr.mxu0 0.0
        %1405 = vmatpush1.msra.mxu0 0.0
        %1406 = vmatprep.subr.mxu0 0.0
        %1407 = vmatpush1.msra.mxu0 0.0
        %1408 = vmatprep.subr.mxu0 0.0
        %1409 = vmatpush1.msra.mxu0 0.0
        %1410 = vmatprep.subr.mxu0 0.0
        %1411 = vmatpush1.msra.mxu0 0.0
        %1412 = vmatprep.subr.mxu0 0.0
        %1413 = vmatpush1.msra.mxu0 0.0
        %1414 = vmatprep.subr.mxu0 0.0
        %1415 = vmatpush1.msra.mxu0 0.0
        %1416 = vmatprep.subr.mxu0 0.0
        %1417 = vmatpush1.msra.mxu0 0.0
        %1418 = vmatprep.subr.mxu0 0.0
        %1419 = vmatpush1.msra.mxu0 0.0
        %1420 = vmatprep.subr.mxu0 0.0
        %1421 = vmatpush1.msra.mxu0 0.0
        %1422 = vmatprep.subr.mxu0 0.0
        %1423 = vmatpush1.msra.mxu0 0.0
        %1424 = vmatprep.subr.mxu0 0.0
        %1425 = vmatpush1.msra.mxu0 0.0
        %1426 = vmatprep.subr.mxu0 0.0
        %1427 = vmatpush1.msra.mxu0 0.0
        %1428 = vmatprep.subr.mxu0 0.0
        %1429 = vmatpush1.msra.mxu0 0.0
        %1430 = vmatprep.subr.mxu0 0.0
        %1431 = vmatpush1.msra.mxu0 0.0
        %1432 = vmatprep.subr.mxu0 0.0
        %1433 = vmatpush1.msra.mxu0 0.0
        %1434 = vmatprep.subr.mxu0 0.0
        %1435 = vmatpush1.msra.mxu0 0.0
        %1436 = vmatprep.subr.mxu0 0.0
        %1437 = vmatpush1.msra.mxu0 0.0
        %1438 = vmatprep.subr.mxu0 0.0
        %1439 = vmatpush1.msra.mxu0 0.0
        %1440 = vmatprep.subr.mxu0 0.0
        %1441 = vmatpush1.msra.mxu0 0.0
        %1442 = vmatprep.subr.mxu0 0.0
        %1443 = vmatpush1.msra.mxu0 0.0
        %1444 = vmatprep.subr.mxu0 0.0
        %1445 = vmatpush1.msra.mxu0 0.0
        %1446 = vmatprep.subr.mxu0 0.0
        %1447 = vmatpush1.msra.mxu0 0.0
        %1448 = vmatprep.subr.mxu0 0.0
        %1449 = vmatpush1.msra.mxu0 0.0
        %1450 = vmatprep.subr.mxu0 0.0
        %1451 = vmatpush1.msra.mxu0 0.0
        %1452 = vmatprep.subr.mxu0 0.0
        %1453 = vmatpush1.msra.mxu0 0.0
        %1454 = vmatprep.subr.mxu0 0.0
        %1455 = vmatpush1.msra.mxu0 0.0
        %1456 = vmatprep.subr.mxu0 0.0
        %1457 = vmatpush1.msra.mxu0 0.0
        %1458 = vmatprep.subr.mxu0 0.0
        %1459 = vmatpush1.msra.mxu0 0.0
        %1460 = vmatprep.mubr.f32.mxu0 0.0
        %1461 = vmatmul.mubr.f32.gmra.mrb[0].mxu0 %v1367
        %v1462 = vpop.f32.mrb[0].mxu0
        %v1463 = vadd.f32 0.0, %v1462
        %v1464 = vpop.f32.mrb[0].mxu0
        %v1465 = vadd.f32 0.0, %v1464
        %1466 = vmatprep.mubr.f32.mxu0 0.0
        %1467 = vmatmul.mubr.f32.gmra.mrb[0].mxu0 %v1370
        %v1468 = vpop.f32.mrb[0].mxu0
        %v1469 = vadd.f32 0.0, %v1468
        %v1470 = vpop.f32.mrb[0].mxu0
        %v1471 = vadd.f32 0.0, %v1470
        %1472 = vmatprep.mubr.f32.mxu0 0.0
        %1473 = vmatmul.mubr.f32.gmra.mrb[0].mxu0 %v1373
        %v1474 = vpop.f32.mrb[0].mxu0
        %v1475 = vadd.f32 0.0, %v1474
        %v1476 = vpop.f32.mrb[0].mxu0
        %v1477 = vadd.f32 0.0, %v1476
        %1478 = vmatprep.mubr.f32.mxu0 0.0
        %1479 = vmatmul.mubr.f32.gmra.mrb[0].mxu0 %v1376
        %v1480 = vpop.f32.mrb[0].mxu0
        %v1481 = vadd.f32 0.0, %v1480
        %v1482 = vpop.f32.mrb[0].mxu0
        %v1483 = vadd.f32 0.0, %v1482
        %1484 = vmatprep.mubr.f32.mxu0 0.0
        %1485 = vmatmul.mubr.f32.gmra.mrb[0].mxu0 %v1379
        %v1486 = vpop.f32.mrb[0].mxu0
        %v1487 = vadd.f32 0.0, %v1486
        %v1488 = vpop.f32.mrb[0].mxu0
        %v1489 = vadd.f32 0.0, %v1488
        %1490 = vmatprep.mubr.f32.mxu0 0.0
        %1491 = vmatmul.mubr.f32.gmra.mrb[0].mxu0 %v1382
        %v1492 = vpop.f32.mrb[0].mxu0
        %v1493 = vadd.f32 0.0, %v1492
        %v1494 = vpop.f32.mrb[0].mxu0
        %v1495 = vadd.f32 0.0, %v1494
        %1496 = vmatprep.mubr.f32.mxu0 0.0
        %1497 = vmatmul.mubr.f32.gmra.mrb[0].mxu0 %v1385
        %v1498 = vpop.f32.mrb[0].mxu0
        %v1499 = vadd.f32 0.0, %v1498
        %v1500 = vpop.f32.mrb[0].mxu0
        %v1501 = vadd.f32 0.0, %v1500
        %1502 = vmatprep.mubr.f32.mxu0 0.0
        %1503 = vmatmul.mubr.f32.gmra.mrb[0].mxu0 %v1388
        %v1504 = vpop.f32.mrb[0].mxu0
        %v1505 = vadd.f32 0.0, %v1504
        %v1506 = vpop.f32.mrb[0].mxu0
        %v1507 = vadd.f32 0.0, %v1506
        %1508 = vdwg.mxu0
        %v1509 = vadd.f32 %v1323, %v1463
        %v1510 = vadd.f32 %v1324, %v1465
        %v1511 = vadd.f32 %v1325, %v1469
        %v1512 = vadd.f32 %v1326, %v1471
        %v1513 = vadd.f32 %v1327, %v1475
        %v1514 = vadd.f32 %v1328, %v1477
        %v1515 = vadd.f32 %v1329, %v1481
        %v1516 = vadd.f32 %v1330, %v1483
        %v1517 = vadd.f32 %v1331, %v1487
        %v1518 = vadd.f32 %v1332, %v1489
        %v1519 = vadd.f32 %v1333, %v1493
        %v1520 = vadd.f32 %v1334, %v1495
        %v1521 = vadd.f32 %v1335, %v1499
        %v1522 = vadd.f32 %v1336, %v1501
        %v1523 = vadd.f32 %v1337, %v1505
        %v1524 = vadd.f32 %v1338, %v1507
        %v1525 = vld [vmem:[%s249] sm:$0xff]
        %v1526 = vld [vmem:[%s249 + $0x8] sm:$0xf]
        %s1527 = scalar_lea.vmem %s2, 448
        %v1528 = vld [vmem:[%s1527] sm:$0xff]
        %v1529 = vld [vmem:[%s1527 + $0x8] sm:$0xff]
        %v1530 = vld [vmem:[%s1527 + $0x10] sm:$0xff]
        %v1531 = vld [vmem:[%s1527 + $0x18] sm:$0xff]
        %v1532 = vld [vmem:[%s1527 + $0x20] sm:$0xff]
        %v1533 = vld [vmem:[%s1527 + $0x28] sm:$0xff]
        %v1534 = vld [vmem:[%s1527 + $0x30] sm:$0xff]
        %v1535 = vld [vmem:[%s1527 + $0x38] sm:$0xff]
        %v1538 = vcombine.high %v1525, %v1525
        %1539 = vrot.lane.b32.xlu0 %v1525, 95
        %v1540 = vpop.permute.xlu0 %1539
        %1541 = vrot.lane.b32.xlu0 %v1538, 95
        %v1542 = vpop.permute.xlu0 %1541
        %1543 = vrot.lane.b32.xlu0 %v1526, 95
        %v1544 = vpop.permute.xlu0 %1543
        %vm1545 = vcmask 777216
        %v1546 = vsel %vm1545, %v1540, %v1542
        %v1547 = vsel %vm1545, %v1542, %v1544
        %v1549 = vsel %vm315, %v1528, 0
        %v1552 = vsel %vm315, %v1529, 0
        %v1555 = vsel %vm315, %v1530, 0
        %v1558 = vsel %vm315, %v1531, 0
        %v1561 = vsel %vm315, %v1532, 0
        %v1564 = vsel %vm315, %v1533, 0
        %v1567 = vsel %vm315, %v1534, 0
        %v1570 = vsel %vm315, %v1535, 0
        %v1572 = vsel %vm340, %v1546, 0
        %v1574 = vsel %vm340, %v1547, 0
        %1576 = vmatprep.subr.mxu0 %v1574
        %1577 = vmatpush1.msra.mxu0 %v1572
        %1578 = vmatprep.subr.mxu0 0.0
        %1579 = vmatpush1.msra.mxu0 0.0
        %1580 = vmatprep.subr.mxu0 0.0
        %1581 = vmatpush1.msra.mxu0 0.0
        %1582 = vmatprep.subr.mxu0 0.0
        %1583 = vmatpush1.msra.mxu0 0.0
        %1584 = vmatprep.subr.mxu0 0.0
        %1585 = vmatpush1.msra.mxu0 0.0
        %1586 = vmatprep.subr.mxu0 0.0
        %1587 = vmatpush1.msra.mxu0 0.0
        %1588 = vmatprep.subr.mxu0 0.0
        %1589 = vmatpush1.msra.mxu0 0.0
        %1590 = vmatprep.subr.mxu0 0.0
        %1591 = vmatpush1.msra.mxu0 0.0
        %1592 = vmatprep.subr.mxu0 0.0
        %1593 = vmatpush1.msra.mxu0 0.0
        %1594 = vmatprep.subr.mxu0 0.0
        %1595 = vmatpush1.msra.mxu0 0.0
        %1596 = vmatprep.subr.mxu0 0.0
        %1597 = vmatpush1.msra.mxu0 0.0
        %1598 = vmatprep.subr.mxu0 0.0
        %1599 = vmatpush1.msra.mxu0 0.0
        %1600 = vmatprep.subr.mxu0 0.0
        %1601 = vmatpush1.msra.mxu0 0.0
        %1602 = vmatprep.subr.mxu0 0.0
        %1603 = vmatpush1.msra.mxu0 0.0
        %1604 = vmatprep.subr.mxu0 0.0
        %1605 = vmatpush1.msra.mxu0 0.0
        %1606 = vmatprep.subr.mxu0 0.0
        %1607 = vmatpush1.msra.mxu0 0.0
        %1608 = vmatprep.subr.mxu0 0.0
        %1609 = vmatpush1.msra.mxu0 0.0
        %1610 = vmatprep.subr.mxu0 0.0
        %1611 = vmatpush1.msra.mxu0 0.0
        %1612 = vmatprep.subr.mxu0 0.0
        %1613 = vmatpush1.msra.mxu0 0.0
        %1614 = vmatprep.subr.mxu0 0.0
        %1615 = vmatpush1.msra.mxu0 0.0
        %1616 = vmatprep.subr.mxu0 0.0
        %1617 = vmatpush1.msra.mxu0 0.0
        %1618 = vmatprep.subr.mxu0 0.0
        %1619 = vmatpush1.msra.mxu0 0.0
        %1620 = vmatprep.subr.mxu0 0.0
        %1621 = vmatpush1.msra.mxu0 0.0
        %1622 = vmatprep.subr.mxu0 0.0
        %1623 = vmatpush1.msra.mxu0 0.0
        %1624 = vmatprep.subr.mxu0 0.0
        %1625 = vmatpush1.msra.mxu0 0.0
        %1626 = vmatprep.subr.mxu0 0.0
        %1627 = vmatpush1.msra.mxu0 0.0
        %1628 = vmatprep.subr.mxu0 0.0
        %1629 = vmatpush1.msra.mxu0 0.0
        %1630 = vmatprep.subr.mxu0 0.0
        %1631 = vmatpush1.msra.mxu0 0.0
        %1632 = vmatprep.subr.mxu0 0.0
        %1633 = vmatpush1.msra.mxu0 0.0
        %1634 = vmatprep.subr.mxu0 0.0
        %1635 = vmatpush1.msra.mxu0 0.0
        %1636 = vmatprep.subr.mxu0 0.0
        %1637 = vmatpush1.msra.mxu0 0.0
        %1638 = vmatprep.subr.mxu0 0.0
        %1639 = vmatpush1.msra.mxu0 0.0
        %1640 = vmatprep.mubr.f32.mxu0 0.0
        %1641 = vmatmul.mubr.f32.gmra.mrb[0].mxu0 %v1549
        %v1642 = vpop.f32.mrb[0].mxu0
        %v1643 = vadd.f32 0.0, %v1642
        %v1644 = vpop.f32.mrb[0].mxu0
        %v1645 = vadd.f32 0.0, %v1644
        %1646 = vmatprep.mubr.f32.mxu0 0.0
        %1647 = vmatmul.mubr.f32.gmra.mrb[0].mxu0 %v1552
        %v1648 = vpop.f32.mrb[0].mxu0
        %v1649 = vadd.f32 0.0, %v1648
        %v1650 = vpop.f32.mrb[0].mxu0
        %v1651 = vadd.f32 0.0, %v1650
        %1652 = vmatprep.mubr.f32.mxu0 0.0
        %1653 = vmatmul.mubr.f32.gmra.mrb[0].mxu0 %v1555
        %v1654 = vpop.f32.mrb[0].mxu0
        %v1655 = vadd.f32 0.0, %v1654
        %v1656 = vpop.f32.mrb[0].mxu0
        %v1657 = vadd.f32 0.0, %v1656
        %1658 = vmatprep.mubr.f32.mxu0 0.0
        %1659 = vmatmul.mubr.f32.gmra.mrb[0].mxu0 %v1558
        %v1660 = vpop.f32.mrb[0].mxu0
        %v1661 = vadd.f32 0.0, %v1660
        %v1662 = vpop.f32.mrb[0].mxu0
        %v1663 = vadd.f32 0.0, %v1662
        %1664 = vmatprep.mubr.f32.mxu0 0.0
        %1665 = vmatmul.mubr.f32.gmra.mrb[0].mxu0 %v1561
        %v1666 = vpop.f32.mrb[0].mxu0
        %v1667 = vadd.f32 0.0, %v1666
        %v1668 = vpop.f32.mrb[0].mxu0
        %v1669 = vadd.f32 0.0, %v1668
        %1670 = vmatprep.mubr.f32.mxu0 0.0
        %1671 = vmatmul.mubr.f32.gmra.mrb[0].mxu0 %v1564
        %v1672 = vpop.f32.mrb[0].mxu0
        %v1673 = vadd.f32 0.0, %v1672
        %v1674 = vpop.f32.mrb[0].mxu0
        %v1675 = vadd.f32 0.0, %v1674
        %1676 = vmatprep.mubr.f32.mxu0 0.0
        %1677 = vmatmul.mubr.f32.gmra.mrb[0].mxu0 %v1567
        %v1678 = vpop.f32.mrb[0].mxu0
        %v1679 = vadd.f32 0.0, %v1678
        %v1680 = vpop.f32.mrb[0].mxu0
        %v1681 = vadd.f32 0.0, %v1680
        %1682 = vmatprep.mubr.f32.mxu0 0.0
        %1683 = vmatmul.mubr.f32.gmra.mrb[0].mxu0 %v1570
        %v1684 = vpop.f32.mrb[0].mxu0
        %v1685 = vadd.f32 0.0, %v1684
        %v1686 = vpop.f32.mrb[0].mxu0
        %v1687 = vadd.f32 0.0, %v1686
        %1688 = vdwg.mxu0
        %v1689 = vadd.f32 %v1509, %v1643
        %v1690 = vadd.f32 %v1510, %v1645
        %v1691 = vadd.f32 %v1511, %v1649
        %v1692 = vadd.f32 %v1512, %v1651
        %v1693 = vadd.f32 %v1513, %v1655
        %v1694 = vadd.f32 %v1514, %v1657
        %v1695 = vadd.f32 %v1515, %v1661
        %v1696 = vadd.f32 %v1516, %v1663
        %v1697 = vadd.f32 %v1517, %v1667
        %v1698 = vadd.f32 %v1518, %v1669
        %v1699 = vadd.f32 %v1519, %v1673
        %v1700 = vadd.f32 %v1520, %v1675
        %v1701 = vadd.f32 %v1521, %v1679
        %v1702 = vadd.f32 %v1522, %v1681
        %v1703 = vadd.f32 %v1523, %v1685
        %v1704 = vadd.f32 %v1524, %v1687
        %v1705 = vld [vmem:[%s249] sm:$0xff]
        %v1706 = vld [vmem:[%s249 + $0x8] sm:$0xf]
        %v1709 = vcombine.high %v1705, %v1705
        %1710 = vrot.lane.b32.xlu0 %v1705, 94
        %v1711 = vpop.permute.xlu0 %1710
        %1712 = vrot.lane.b32.xlu0 %v1709, 94
        %v1713 = vpop.permute.xlu0 %1712
        %1714 = vrot.lane.b32.xlu0 %v1706, 94
        %v1715 = vpop.permute.xlu0 %1714
        %vm1716 = vcmask 769024
        %v1717 = vsel %vm1716, %v1711, %v1713
        %v1718 = vsel %vm1716, %v1713, %v1715
        %v1721 = vsel %vm279, %v1717, 0.0
        %v1722 = vsel %vm280, %v1718, 0.0
        %s1723 = scalar_lea.vmem %s2, 512
        %v1724 = vld [vmem:[%s1723] sm:$0xff]
        %v1725 = vld [vmem:[%s1723 + $0x8] sm:$0xff]
        %v1726 = vld [vmem:[%s1723 + $0x10] sm:$0xff]
        %v1727 = vld [vmem:[%s1723 + $0x18] sm:$0xff]
        %v1728 = vld [vmem:[%s1723 + $0x20] sm:$0xff]
        %v1729 = vld [vmem:[%s1723 + $0x28] sm:$0xff]
        %v1730 = vld [vmem:[%s1723 + $0x30] sm:$0xff]
        %v1731 = vld [vmem:[%s1723 + $0x38] sm:$0xff]
        %v1733 = vsel %vm315, %v1724, 0
        %v1736 = vsel %vm315, %v1725, 0
        %v1739 = vsel %vm315, %v1726, 0
        %v1742 = vsel %vm315, %v1727, 0
        %v1745 = vsel %vm315, %v1728, 0
        %v1748 = vsel %vm315, %v1729, 0
        %v1751 = vsel %vm315, %v1730, 0
        %v1754 = vsel %vm315, %v1731, 0
        %v1757 = vsel %vm340, %v1721, 0
        %v1760 = vsel %vm340, %v1722, 0
        %1762 = vmatprep.subr.mxu0 %v1760
        %1763 = vmatpush1.msra.mxu0 %v1757
        %1764 = vmatprep.subr.mxu0 0.0
        %1765 = vmatpush1.msra.mxu0 0.0
        %1766 = vmatprep.subr.mxu0 0.0
        %1767 = vmatpush1.msra.mxu0 0.0
        %1768 = vmatprep.subr.mxu0 0.0
        %1769 = vmatpush1.msra.mxu0 0.0
        %1770 = vmatprep.subr.mxu0 0.0
        %1771 = vmatpush1.msra.mxu0 0.0
        %1772 = vmatprep.subr.mxu0 0.0
        %1773 = vmatpush1.msra.mxu0 0.0
        %1774 = vmatprep.subr.mxu0 0.0
        %1775 = vmatpush1.msra.mxu0 0.0
        %1776 = vmatprep.subr.mxu0 0.0
        %1777 = vmatpush1.msra.mxu0 0.0
        %1778 = vmatprep.subr.mxu0 0.0
        %1779 = vmatpush1.msra.mxu0 0.0
        %1780 = vmatprep.subr.mxu0 0.0
        %1781 = vmatpush1.msra.mxu0 0.0
        %1782 = vmatprep.subr.mxu0 0.0
        %1783 = vmatpush1.msra.mxu0 0.0
        %1784 = vmatprep.subr.mxu0 0.0
        %1785 = vmatpush1.msra.mxu0 0.0
        %1786 = vmatprep.subr.mxu0 0.0
        %1787 = vmatpush1.msra.mxu0 0.0
        %1788 = vmatprep.subr.mxu0 0.0
        %1789 = vmatpush1.msra.mxu0 0.0
        %1790 = vmatprep.subr.mxu0 0.0
        %1791 = vmatpush1.msra.mxu0 0.0
        %1792 = vmatprep.subr.mxu0 0.0
        %1793 = vmatpush1.msra.mxu0 0.0
        %1794 = vmatprep.subr.mxu0 0.0
        %1795 = vmatpush1.msra.mxu0 0.0
        %1796 = vmatprep.subr.mxu0 0.0
        %1797 = vmatpush1.msra.mxu0 0.0
        %1798 = vmatprep.subr.mxu0 0.0
        %1799 = vmatpush1.msra.mxu0 0.0
        %1800 = vmatprep.subr.mxu0 0.0
        %1801 = vmatpush1.msra.mxu0 0.0
        %1802 = vmatprep.subr.mxu0 0.0
        %1803 = vmatpush1.msra.mxu0 0.0
        %1804 = vmatprep.subr.mxu0 0.0
        %1805 = vmatpush1.msra.mxu0 0.0
        %1806 = vmatprep.subr.mxu0 0.0
        %1807 = vmatpush1.msra.mxu0 0.0
        %1808 = vmatprep.subr.mxu0 0.0
        %1809 = vmatpush1.msra.mxu0 0.0
        %1810 = vmatprep.subr.mxu0 0.0
        %1811 = vmatpush1.msra.mxu0 0.0
        %1812 = vmatprep.subr.mxu0 0.0
        %1813 = vmatpush1.msra.mxu0 0.0
        %1814 = vmatprep.subr.mxu0 0.0
        %1815 = vmatpush1.msra.mxu0 0.0
        %1816 = vmatprep.subr.mxu0 0.0
        %1817 = vmatpush1.msra.mxu0 0.0
        %1818 = vmatprep.subr.mxu0 0.0
        %1819 = vmatpush1.msra.mxu0 0.0
        %1820 = vmatprep.subr.mxu0 0.0
        %1821 = vmatpush1.msra.mxu0 0.0
        %1822 = vmatprep.subr.mxu0 0.0
        %1823 = vmatpush1.msra.mxu0 0.0
        %1824 = vmatprep.subr.mxu0 0.0
        %1825 = vmatpush1.msra.mxu0 0.0
        %1826 = vmatprep.mubr.f32.mxu0 0.0
        %1827 = vmatmul.mubr.f32.gmra.mrb[0].mxu0 %v1733
        %v1828 = vpop.f32.mrb[0].mxu0
        %v1829 = vadd.f32 0.0, %v1828
        %v1830 = vpop.f32.mrb[0].mxu0
        %v1831 = vadd.f32 0.0, %v1830
        %1832 = vmatprep.mubr.f32.mxu0 0.0
        %1833 = vmatmul.mubr.f32.gmra.mrb[0].mxu0 %v1736
        %v1834 = vpop.f32.mrb[0].mxu0
        %v1835 = vadd.f32 0.0, %v1834
        %v1836 = vpop.f32.mrb[0].mxu0
        %v1837 = vadd.f32 0.0, %v1836
        %1838 = vmatprep.mubr.f32.mxu0 0.0
        %1839 = vmatmul.mubr.f32.gmra.mrb[0].mxu0 %v1739
        %v1840 = vpop.f32.mrb[0].mxu0
        %v1841 = vadd.f32 0.0, %v1840
        %v1842 = vpop.f32.mrb[0].mxu0
        %v1843 = vadd.f32 0.0, %v1842
        %1844 = vmatprep.mubr.f32.mxu0 0.0
        %1845 = vmatmul.mubr.f32.gmra.mrb[0].mxu0 %v1742
        %v1846 = vpop.f32.mrb[0].mxu0
        %v1847 = vadd.f32 0.0, %v1846
        %v1848 = vpop.f32.mrb[0].mxu0
        %v1849 = vadd.f32 0.0, %v1848
        %1850 = vmatprep.mubr.f32.mxu0 0.0
        %1851 = vmatmul.mubr.f32.gmra.mrb[0].mxu0 %v1745
        %v1852 = vpop.f32.mrb[0].mxu0
        %v1853 = vadd.f32 0.0, %v1852
        %v1854 = vpop.f32.mrb[0].mxu0
        %v1855 = vadd.f32 0.0, %v1854
        %1856 = vmatprep.mubr.f32.mxu0 0.0
        %1857 = vmatmul.mubr.f32.gmra.mrb[0].mxu0 %v1748
        %v1858 = vpop.f32.mrb[0].mxu0
        %v1859 = vadd.f32 0.0, %v1858
        %v1860 = vpop.f32.mrb[0].mxu0
        %v1861 = vadd.f32 0.0, %v1860
        %1862 = vmatprep.mubr.f32.mxu0 0.0
        %1863 = vmatmul.mubr.f32.gmra.mrb[0].mxu0 %v1751
        %v1864 = vpop.f32.mrb[0].mxu0
        %v1865 = vadd.f32 0.0, %v1864
        %v1866 = vpop.f32.mrb[0].mxu0
        %v1867 = vadd.f32 0.0, %v1866
        %1868 = vmatprep.mubr.f32.mxu0 0.0
        %1869 = vmatmul.mubr.f32.gmra.mrb[0].mxu0 %v1754
        %v1870 = vpop.f32.mrb[0].mxu0
        %v1871 = vadd.f32 0.0, %v1870
        %v1872 = vpop.f32.mrb[0].mxu0
        %v1873 = vadd.f32 0.0, %v1872
        %1874 = vdwg.mxu0
        %v1875 = vadd.f32 %v1689, %v1829
        %v1876 = vadd.f32 %v1690, %v1831
        %v1877 = vadd.f32 %v1691, %v1835
        %v1878 = vadd.f32 %v1692, %v1837
        %v1879 = vadd.f32 %v1693, %v1841
        %v1880 = vadd.f32 %v1694, %v1843
        %v1881 = vadd.f32 %v1695, %v1847
        %v1882 = vadd.f32 %v1696, %v1849
        %v1883 = vadd.f32 %v1697, %v1853
        %v1884 = vadd.f32 %v1698, %v1855
        %v1885 = vadd.f32 %v1699, %v1859
        %v1886 = vadd.f32 %v1700, %v1861
        %v1887 = vadd.f32 %v1701, %v1865
        %v1888 = vadd.f32 %v1702, %v1867
        %v1889 = vadd.f32 %v1703, %v1871
        %v1890 = vadd.f32 %v1704, %v1873
        %v1891 = vld [vmem:[%s3] sm:$0xff]
        %v1892 = vld [vmem:[%s3 + $0x8] sm:$0xff]
        %v1893 = vld [vmem:[%s3 + $0x10] sm:$0xff]
        %v1894 = vld [vmem:[%s3 + $0x18] sm:$0xff]
        %v1895 = vld [vmem:[%s3 + $0x20] sm:$0xff]
        %v1896 = vld [vmem:[%s3 + $0x28] sm:$0xff]
        %v1897 = vld [vmem:[%s3 + $0x30] sm:$0xff]
        %v1898 = vld [vmem:[%s3 + $0x38] sm:$0xff]
        %1899 = vmatprep.subr.mxu0 0.0
        %1900 = vmatpush1.msra.mxu0 1.0
        %1901 = vmatprep.subr.mxu0 0.0
        %1902 = vmatpush1.msra.mxu0 1.0
        %1903 = vmatprep.subr.mxu0 0.0
        %1904 = vmatpush1.msra.mxu0 1.0
        %1905 = vmatprep.subr.mxu0 0.0
        %1906 = vmatpush1.msra.mxu0 1.0
        %1907 = vmatprep.subr.mxu0 0.0
        %1908 = vmatpush1.msra.mxu0 1.0
        %1909 = vmatprep.subr.mxu0 0.0
        %1910 = vmatpush1.msra.mxu0 1.0
        %1911 = vmatprep.subr.mxu0 0.0
        %1912 = vmatpush1.msra.mxu0 1.0
        %1913 = vmatprep.subr.mxu0 0.0
        %1914 = vmatpush1.msra.mxu0 1.0
        %1915 = vmatprep.subr.mxu0 0.0
        %1916 = vmatpush1.msra.mxu0 1.0
        %1917 = vmatprep.subr.mxu0 0.0
        %1918 = vmatpush1.msra.mxu0 1.0
        %1919 = vmatprep.subr.mxu0 0.0
        %1920 = vmatpush1.msra.mxu0 1.0
        %1921 = vmatprep.subr.mxu0 0.0
        %1922 = vmatpush1.msra.mxu0 1.0
        %1923 = vmatprep.subr.mxu0 0.0
        %1924 = vmatpush1.msra.mxu0 1.0
        %1925 = vmatprep.subr.mxu0 0.0
        %1926 = vmatpush1.msra.mxu0 1.0
        %1927 = vmatprep.subr.mxu0 0.0
        %1928 = vmatpush1.msra.mxu0 1.0
        %1929 = vmatprep.subr.mxu0 0.0
        %1930 = vmatpush1.msra.mxu0 1.0
        %1931 = vmatprep.subr.mxu0 0.0
        %1932 = vmatpush1.msra.mxu0 1.0
        %1933 = vmatprep.subr.mxu0 0.0
        %1934 = vmatpush1.msra.mxu0 1.0
        %1935 = vmatprep.subr.mxu0 0.0
        %1936 = vmatpush1.msra.mxu0 1.0
        %1937 = vmatprep.subr.mxu0 0.0
        %1938 = vmatpush1.msra.mxu0 1.0
        %1939 = vmatprep.subr.mxu0 0.0
        %1940 = vmatpush1.msra.mxu0 1.0
        %1941 = vmatprep.subr.mxu0 0.0
        %1942 = vmatpush1.msra.mxu0 1.0
        %1943 = vmatprep.subr.mxu0 0.0
        %1944 = vmatpush1.msra.mxu0 1.0
        %1945 = vmatprep.subr.mxu0 0.0
        %1946 = vmatpush1.msra.mxu0 1.0
        %1947 = vmatprep.subr.mxu0 0.0
        %1948 = vmatpush1.msra.mxu0 1.0
        %1949 = vmatprep.subr.mxu0 0.0
        %1950 = vmatpush1.msra.mxu0 1.0
        %1951 = vmatprep.subr.mxu0 0.0
        %1952 = vmatpush1.msra.mxu0 1.0
        %1953 = vmatprep.subr.mxu0 0.0
        %1954 = vmatpush1.msra.mxu0 1.0
        %1955 = vmatprep.subr.mxu0 0.0
        %1956 = vmatpush1.msra.mxu0 1.0
        %1957 = vmatprep.subr.mxu0 0.0
        %1958 = vmatpush1.msra.mxu0 1.0
        %1959 = vmatprep.subr.mxu0 0.0
        %1960 = vmatpush1.msra.mxu0 1.0
        %1961 = vmatprep.subr.mxu0 0.0
        %1962 = vmatpush1.msra.mxu0 1.0
        %1963 = vmatprep.mubr.f32.mxu0 %v1876
        %1964 = vmatmul.mubr.f32.gmra.mrb[0].mxu0 %v1875
        %v1965 = vpop.f32.mrb[0].mxu0
        %v1966 = vadd.f32 0.0, %v1965
        %v1967 = vpop.f32.mrb[0].mxu0
        %1968 = vmatprep.mubr.f32.mxu0 %v1878
        %1969 = vmatmul.mubr.f32.gmra.mrb[0].mxu0 %v1877
        %v1970 = vpop.f32.mrb[0].mxu0
        %v1971 = vadd.f32 0.0, %v1970
        %v1972 = vpop.f32.mrb[0].mxu0
        %1973 = vmatprep.mubr.f32.mxu0 %v1880
        %1974 = vmatmul.mubr.f32.gmra.mrb[0].mxu0 %v1879
        %v1975 = vpop.f32.mrb[0].mxu0
        %v1976 = vadd.f32 0.0, %v1975
        %v1977 = vpop.f32.mrb[0].mxu0
        %1978 = vmatprep.mubr.f32.mxu0 %v1882
        %1979 = vmatmul.mubr.f32.gmra.mrb[0].mxu0 %v1881
        %v1980 = vpop.f32.mrb[0].mxu0
        %v1981 = vadd.f32 0.0, %v1980
        %v1982 = vpop.f32.mrb[0].mxu0
        %1983 = vmatprep.mubr.f32.mxu0 %v1884
        %1984 = vmatmul.mubr.f32.gmra.mrb[0].mxu0 %v1883
        %v1985 = vpop.f32.mrb[0].mxu0
        %v1986 = vadd.f32 0.0, %v1985
        %v1987 = vpop.f32.mrb[0].mxu0
        %1988 = vmatprep.mubr.f32.mxu0 %v1886
        %1989 = vmatmul.mubr.f32.gmra.mrb[0].mxu0 %v1885
        %v1990 = vpop.f32.mrb[0].mxu0
        %v1991 = vadd.f32 0.0, %v1990
        %v1992 = vpop.f32.mrb[0].mxu0
        %1993 = vmatprep.mubr.f32.mxu0 %v1888
        %1994 = vmatmul.mubr.f32.gmra.mrb[0].mxu0 %v1887
        %v1995 = vpop.f32.mrb[0].mxu0
        %v1996 = vadd.f32 0.0, %v1995
        %v1997 = vpop.f32.mrb[0].mxu0
        %1998 = vmatprep.mubr.f32.mxu0 %v1890
        %1999 = vmatmul.mubr.f32.gmra.mrb[0].mxu0 %v1889
        %v2000 = vpop.f32.mrb[0].mxu0
        %v2001 = vadd.f32 0.0, %v2000
        %v2002 = vpop.f32.mrb[0].mxu0
        %2003 = vdwg.mxu0
        %v2004 = vmul.f32 %v1875, %v1875
        %v2005 = vmul.f32 %v1876, %v1876
        %v2006 = vmul.f32 %v1877, %v1877
        %v2007 = vmul.f32 %v1878, %v1878
        %v2008 = vmul.f32 %v1879, %v1879
        %v2009 = vmul.f32 %v1880, %v1880
        %v2010 = vmul.f32 %v1881, %v1881
        %v2011 = vmul.f32 %v1882, %v1882
        %v2012 = vmul.f32 %v1883, %v1883
        %v2013 = vmul.f32 %v1884, %v1884
        %v2014 = vmul.f32 %v1885, %v1885
        %v2015 = vmul.f32 %v1886, %v1886
        %v2016 = vmul.f32 %v1887, %v1887
        %v2017 = vmul.f32 %v1888, %v1888
        %v2018 = vmul.f32 %v1889, %v1889
        %v2019 = vmul.f32 %v1890, %v1890
        %v2020 = vmul.f32 %v1891, 256.0
        %v2021 = vmul.f32 %v1892, 256.0
        %v2022 = vmul.f32 %v1893, 256.0
        %v2023 = vmul.f32 %v1894, 256.0
        %v2024 = vmul.f32 %v1895, 256.0
        %v2025 = vmul.f32 %v1896, 256.0
        %v2026 = vmul.f32 %v1897, 256.0
        %v2027 = vmul.f32 %v1898, 256.0
        %v2028 = vadd.f32 %v1966, %v2020
        %v2029 = vadd.f32 %v1971, %v2021
        %v2030 = vadd.f32 %v1976, %v2022
        %v2031 = vadd.f32 %v1981, %v2023
        %v2032 = vadd.f32 %v1986, %v2024
        %v2033 = vadd.f32 %v1991, %v2025
        %v2034 = vadd.f32 %v1996, %v2026
        %v2035 = vadd.f32 %v2001, %v2027
        %v2036 = vmul.f32 %v1891, 2.0
        %v2037 = vmul.f32 %v1892, 2.0
        %v2038 = vmul.f32 %v1893, 2.0
        %v2039 = vmul.f32 %v1894, 2.0
        %v2040 = vmul.f32 %v1895, 2.0
        %v2041 = vmul.f32 %v1896, 2.0
        %v2042 = vmul.f32 %v1897, 2.0
        %v2043 = vmul.f32 %v1898, 2.0
        %v2044 = vmul.f32 %v2036, %v1966
        %v2045 = vmul.f32 %v2037, %v1971
        %v2046 = vmul.f32 %v2038, %v1976
        %v2047 = vmul.f32 %v2039, %v1981
        %v2048 = vmul.f32 %v2040, %v1986
        %v2049 = vmul.f32 %v2041, %v1991
        %v2050 = vmul.f32 %v2042, %v1996
        %v2051 = vmul.f32 %v2043, %v2001
        %2052 = vmatprep.subr.mxu0 0.0
        %2053 = vmatpush1.msra.mxu0 1.0
        %2054 = vmatprep.subr.mxu0 0.0
        %2055 = vmatpush1.msra.mxu0 1.0
        %2056 = vmatprep.subr.mxu0 0.0
        %2057 = vmatpush1.msra.mxu0 1.0
        %2058 = vmatprep.subr.mxu0 0.0
        %2059 = vmatpush1.msra.mxu0 1.0
        %2060 = vmatprep.subr.mxu0 0.0
        %2061 = vmatpush1.msra.mxu0 1.0
        %2062 = vmatprep.subr.mxu0 0.0
        %2063 = vmatpush1.msra.mxu0 1.0
        %2064 = vmatprep.subr.mxu0 0.0
        %2065 = vmatpush1.msra.mxu0 1.0
        %2066 = vmatprep.subr.mxu0 0.0
        %2067 = vmatpush1.msra.mxu0 1.0
        %2068 = vmatprep.subr.mxu0 0.0
        %2069 = vmatpush1.msra.mxu0 1.0
        %2070 = vmatprep.subr.mxu0 0.0
        %2071 = vmatpush1.msra.mxu0 1.0
        %2072 = vmatprep.subr.mxu0 0.0
        %2073 = vmatpush1.msra.mxu0 1.0
        %2074 = vmatprep.subr.mxu0 0.0
        %2075 = vmatpush1.msra.mxu0 1.0
        %2076 = vmatprep.subr.mxu0 0.0
        %2077 = vmatpush1.msra.mxu0 1.0
        %2078 = vmatprep.subr.mxu0 0.0
        %2079 = vmatpush1.msra.mxu0 1.0
        %2080 = vmatprep.subr.mxu0 0.0
        %2081 = vmatpush1.msra.mxu0 1.0
        %2082 = vmatprep.subr.mxu0 0.0
        %2083 = vmatpush1.msra.mxu0 1.0
        %2084 = vmatprep.subr.mxu0 0.0
        %2085 = vmatpush1.msra.mxu0 1.0
        %2086 = vmatprep.subr.mxu0 0.0
        %2087 = vmatpush1.msra.mxu0 1.0
        %2088 = vmatprep.subr.mxu0 0.0
        %2089 = vmatpush1.msra.mxu0 1.0
        %2090 = vmatprep.subr.mxu0 0.0
        %2091 = vmatpush1.msra.mxu0 1.0
        %2092 = vmatprep.subr.mxu0 0.0
        %2093 = vmatpush1.msra.mxu0 1.0
        %2094 = vmatprep.subr.mxu0 0.0
        %2095 = vmatpush1.msra.mxu0 1.0
        %2096 = vmatprep.subr.mxu0 0.0
        %2097 = vmatpush1.msra.mxu0 1.0
        %2098 = vmatprep.subr.mxu0 0.0
        %2099 = vmatpush1.msra.mxu0 1.0
        %2100 = vmatprep.subr.mxu0 0.0
        %2101 = vmatpush1.msra.mxu0 1.0
        %2102 = vmatprep.subr.mxu0 0.0
        %2103 = vmatpush1.msra.mxu0 1.0
        %2104 = vmatprep.subr.mxu0 0.0
        %2105 = vmatpush1.msra.mxu0 1.0
        %2106 = vmatprep.subr.mxu0 0.0
        %2107 = vmatpush1.msra.mxu0 1.0
        %2108 = vmatprep.subr.mxu0 0.0
        %2109 = vmatpush1.msra.mxu0 1.0
        %2110 = vmatprep.subr.mxu0 0.0
        %2111 = vmatpush1.msra.mxu0 1.0
        %2112 = vmatprep.subr.mxu0 0.0
        %2113 = vmatpush1.msra.mxu0 1.0
        %2114 = vmatprep.subr.mxu0 0.0
        %2115 = vmatpush1.msra.mxu0 1.0
        %2116 = vmatprep.mubr.f32.mxu0 %v2005
        %2117 = vmatmul.mubr.f32.gmra.mrb[0].mxu0 %v2004
        %v2118 = vpop.f32.mrb[0].mxu0
        %v2119 = vadd.f32 %v2044, %v2118
        %v2120 = vpop.f32.mrb[0].mxu0
        %2121 = vmatprep.mubr.f32.mxu0 %v2007
        %2122 = vmatmul.mubr.f32.gmra.mrb[0].mxu0 %v2006
        %v2123 = vpop.f32.mrb[0].mxu0
        %v2124 = vadd.f32 %v2045, %v2123
        %v2125 = vpop.f32.mrb[0].mxu0
        %2126 = vmatprep.mubr.f32.mxu0 %v2009
        %2127 = vmatmul.mubr.f32.gmra.mrb[0].mxu0 %v2008
        %v2128 = vpop.f32.mrb[0].mxu0
        %v2129 = vadd.f32 %v2046, %v2128
        %v2130 = vpop.f32.mrb[0].mxu0
        %2131 = vmatprep.mubr.f32.mxu0 %v2011
        %2132 = vmatmul.mubr.f32.gmra.mrb[0].mxu0 %v2010
        %v2133 = vpop.f32.mrb[0].mxu0
        %v2134 = vadd.f32 %v2047, %v2133
        %v2135 = vpop.f32.mrb[0].mxu0
        %2136 = vmatprep.mubr.f32.mxu0 %v2013
        %2137 = vmatmul.mubr.f32.gmra.mrb[0].mxu0 %v2012
        %v2138 = vpop.f32.mrb[0].mxu0
        %v2139 = vadd.f32 %v2048, %v2138
        %v2140 = vpop.f32.mrb[0].mxu0
        %2141 = vmatprep.mubr.f32.mxu0 %v2015
        %2142 = vmatmul.mubr.f32.gmra.mrb[0].mxu0 %v2014
        %v2143 = vpop.f32.mrb[0].mxu0
        %v2144 = vadd.f32 %v2049, %v2143
        %v2145 = vpop.f32.mrb[0].mxu0
        %2146 = vmatprep.mubr.f32.mxu0 %v2017
        %2147 = vmatmul.mubr.f32.gmra.mrb[0].mxu0 %v2016
        %v2148 = vpop.f32.mrb[0].mxu0
        %v2149 = vadd.f32 %v2050, %v2148
        %v2150 = vpop.f32.mrb[0].mxu0
        %2151 = vmatprep.mubr.f32.mxu0 %v2019
        %2152 = vmatmul.mubr.f32.gmra.mrb[0].mxu0 %v2018
        %v2153 = vpop.f32.mrb[0].mxu0
        %v2154 = vadd.f32 %v2051, %v2153
        %v2155 = vpop.f32.mrb[0].mxu0
        %2156 = vdwg.mxu0
        %v2157 = vmul.f32 %v2020, %v1891
        %v2158 = vmul.f32 %v2021, %v1892
        %v2159 = vmul.f32 %v2022, %v1893
        %v2160 = vmul.f32 %v2023, %v1894
        %v2161 = vmul.f32 %v2024, %v1895
        %v2162 = vmul.f32 %v2025, %v1896
        %v2163 = vmul.f32 %v2026, %v1897
        %v2164 = vmul.f32 %v2027, %v1898
        %v2165 = vadd.f32 %v2119, %v2157
        %v2166 = vadd.f32 %v2124, %v2158
        %v2167 = vadd.f32 %v2129, %v2159
        %v2168 = vadd.f32 %v2134, %v2160
        %v2169 = vadd.f32 %v2139, %v2161
        %v2170 = vadd.f32 %v2144, %v2162
        %v2171 = vadd.f32 %v2149, %v2163
        %v2172 = vadd.f32 %v2154, %v2164
        %v2173 = vld [vmem:[%s0] sm:$0xff]
        %v2174 = vld [vmem:[%s0 + $0x8] sm:$0xff]
        %v2175 = vld [vmem:[%s0 + $0x10] sm:$0xff]
        %v2176 = vld [vmem:[%s0 + $0x18] sm:$0xff]
        %v2177 = vld [vmem:[%s0 + $0x20] sm:$0xff]
        %v2178 = vld [vmem:[%s0 + $0x28] sm:$0xff]
        %v2179 = vld [vmem:[%s0 + $0x30] sm:$0xff]
        %v2180 = vld [vmem:[%s0 + $0x38] sm:$0xff]
        %vm2181 = vcmask 523264
        %v2183 = vsel %vm2181, %v2173, 0
        %v2186 = vsel %vm2181, %v2174, 0
        %v2189 = vsel %vm2181, %v2175, 0
        %v2192 = vsel %vm2181, %v2176, 0
        %v2195 = vsel %vm2181, %v2177, 0
        %v2198 = vsel %vm2181, %v2178, 0
        %v2201 = vsel %vm2181, %v2179, 0
        %v2204 = vsel %vm2181, %v2180, 0
        %2206 = vmatprep.subr.mxu0 0.0
        %2207 = vmatpush1.msra.mxu0 %v2028
        %2208 = vmatprep.subr.mxu0 0.0
        %2209 = vmatpush1.msra.mxu0 %v2029
        %2210 = vmatprep.subr.mxu0 0.0
        %2211 = vmatpush1.msra.mxu0 %v2030
        %2212 = vmatprep.subr.mxu0 0.0
        %2213 = vmatpush1.msra.mxu0 %v2031
        %2214 = vmatprep.subr.mxu0 0.0
        %2215 = vmatpush1.msra.mxu0 %v2032
        %2216 = vmatprep.subr.mxu0 0.0
        %2217 = vmatpush1.msra.mxu0 %v2033
        %2218 = vmatprep.subr.mxu0 0.0
        %2219 = vmatpush1.msra.mxu0 %v2034
        %2220 = vmatprep.subr.mxu0 0.0
        %2221 = vmatpush1.msra.mxu0 %v2035
        %2222 = vmatprep.subr.mxu0 0.0
        %2223 = vmatpush1.msra.mxu0 0.0
        %2224 = vmatprep.subr.mxu0 0.0
        %2225 = vmatpush1.msra.mxu0 0.0
        %2226 = vmatprep.subr.mxu0 0.0
        %2227 = vmatpush1.msra.mxu0 0.0
        %2228 = vmatprep.subr.mxu0 0.0
        %2229 = vmatpush1.msra.mxu0 0.0
        %2230 = vmatprep.subr.mxu0 0.0
        %2231 = vmatpush1.msra.mxu0 0.0
        %2232 = vmatprep.subr.mxu0 0.0
        %2233 = vmatpush1.msra.mxu0 0.0
        %2234 = vmatprep.subr.mxu0 0.0
        %2235 = vmatpush1.msra.mxu0 0.0
        %2236 = vmatprep.subr.mxu0 0.0
        %2237 = vmatpush1.msra.mxu0 0.0
        %2238 = vmatprep.subr.mxu0 0.0
        %2239 = vmatpush1.msra.mxu0 0.0
        %2240 = vmatprep.subr.mxu0 0.0
        %2241 = vmatpush1.msra.mxu0 0.0
        %2242 = vmatprep.subr.mxu0 0.0
        %2243 = vmatpush1.msra.mxu0 0.0
        %2244 = vmatprep.subr.mxu0 0.0
        %2245 = vmatpush1.msra.mxu0 0.0
        %2246 = vmatprep.subr.mxu0 0.0
        %2247 = vmatpush1.msra.mxu0 0.0
        %2248 = vmatprep.subr.mxu0 0.0
        %2249 = vmatpush1.msra.mxu0 0.0
        %2250 = vmatprep.subr.mxu0 0.0
        %2251 = vmatpush1.msra.mxu0 0.0
        %2252 = vmatprep.subr.mxu0 0.0
        %2253 = vmatpush1.msra.mxu0 0.0
        %2254 = vmatprep.subr.mxu0 0.0
        %2255 = vmatpush1.msra.mxu0 0.0
        %2256 = vmatprep.subr.mxu0 0.0
        %2257 = vmatpush1.msra.mxu0 0.0
        %2258 = vmatprep.subr.mxu0 0.0
        %2259 = vmatpush1.msra.mxu0 0.0
        %2260 = vmatprep.subr.mxu0 0.0
        %2261 = vmatpush1.msra.mxu0 0.0
        %2262 = vmatprep.subr.mxu0 0.0
        %2263 = vmatpush1.msra.mxu0 0.0
        %2264 = vmatprep.subr.mxu0 0.0
        %2265 = vmatpush1.msra.mxu0 0.0
        %2266 = vmatprep.subr.mxu0 0.0
        %2267 = vmatpush1.msra.mxu0 0.0
        %2268 = vmatprep.subr.mxu0 0.0
        %2269 = vmatpush1.msra.mxu0 0.0
        %2270 = vmatprep.mubr.f32.mxu0 0.0
        %2271 = vmatmul.mubr.f32.gmra.mrb[0].mxu0 %v2183
        %v2272 = vpop.f32.mrb[0].mxu0
        %v2273 = vadd.f32 0.0, %v2272
        %v2274 = vpop.f32.mrb[0].mxu0
        %2275 = vmatprep.mubr.f32.mxu0 0.0
        %2276 = vmatmul.mubr.f32.gmra.mrb[0].mxu0 %v2186
        %v2277 = vpop.f32.mrb[0].mxu0
        %v2278 = vadd.f32 0.0, %v2277
        %v2279 = vpop.f32.mrb[0].mxu0
        %2280 = vmatprep.mubr.f32.mxu0 0.0
        %2281 = vmatmul.mubr.f32.gmra.mrb[0].mxu0 %v2189
        %v2282 = vpop.f32.mrb[0].mxu0
        %v2283 = vadd.f32 0.0, %v2282
        %v2284 = vpop.f32.mrb[0].mxu0
        %2285 = vmatprep.mubr.f32.mxu0 0.0
        %2286 = vmatmul.mubr.f32.gmra.mrb[0].mxu0 %v2192
        %v2287 = vpop.f32.mrb[0].mxu0
        %v2288 = vadd.f32 0.0, %v2287
        %v2289 = vpop.f32.mrb[0].mxu0
        %2290 = vmatprep.mubr.f32.mxu0 0.0
        %2291 = vmatmul.mubr.f32.gmra.mrb[0].mxu0 %v2195
        %v2292 = vpop.f32.mrb[0].mxu0
        %v2293 = vadd.f32 0.0, %v2292
        %v2294 = vpop.f32.mrb[0].mxu0
        %2295 = vmatprep.mubr.f32.mxu0 0.0
        %2296 = vmatmul.mubr.f32.gmra.mrb[0].mxu0 %v2198
        %v2297 = vpop.f32.mrb[0].mxu0
        %v2298 = vadd.f32 0.0, %v2297
        %v2299 = vpop.f32.mrb[0].mxu0
        %2300 = vmatprep.mubr.f32.mxu0 0.0
        %2301 = vmatmul.mubr.f32.gmra.mrb[0].mxu0 %v2201
        %v2302 = vpop.f32.mrb[0].mxu0
        %v2303 = vadd.f32 0.0, %v2302
        %v2304 = vpop.f32.mrb[0].mxu0
        %2305 = vmatprep.mubr.f32.mxu0 0.0
        %2306 = vmatmul.mubr.f32.gmra.mrb[0].mxu0 %v2204
        %v2307 = vpop.f32.mrb[0].mxu0
        %v2308 = vadd.f32 0.0, %v2307
        %v2309 = vpop.f32.mrb[0].mxu0
        %2310 = vdwg.mxu0
        %2311 = vmatprep.subr.mxu0 0.0
        %2312 = vmatpush1.msra.mxu0 %v2165
        %2313 = vmatprep.subr.mxu0 0.0
        %2314 = vmatpush1.msra.mxu0 %v2166
        %2315 = vmatprep.subr.mxu0 0.0
        %2316 = vmatpush1.msra.mxu0 %v2167
        %2317 = vmatprep.subr.mxu0 0.0
        %2318 = vmatpush1.msra.mxu0 %v2168
        %2319 = vmatprep.subr.mxu0 0.0
        %2320 = vmatpush1.msra.mxu0 %v2169
        %2321 = vmatprep.subr.mxu0 0.0
        %2322 = vmatpush1.msra.mxu0 %v2170
        %2323 = vmatprep.subr.mxu0 0.0
        %2324 = vmatpush1.msra.mxu0 %v2171
        %2325 = vmatprep.subr.mxu0 0.0
        %2326 = vmatpush1.msra.mxu0 %v2172
        %2327 = vmatprep.subr.mxu0 0.0
        %2328 = vmatpush1.msra.mxu0 0.0
        %2329 = vmatprep.subr.mxu0 0.0
        %2330 = vmatpush1.msra.mxu0 0.0
        %2331 = vmatprep.subr.mxu0 0.0
        %2332 = vmatpush1.msra.mxu0 0.0
        %2333 = vmatprep.subr.mxu0 0.0
        %2334 = vmatpush1.msra.mxu0 0.0
        %2335 = vmatprep.subr.mxu0 0.0
        %2336 = vmatpush1.msra.mxu0 0.0
        %2337 = vmatprep.subr.mxu0 0.0
        %2338 = vmatpush1.msra.mxu0 0.0
        %2339 = vmatprep.subr.mxu0 0.0
        %2340 = vmatpush1.msra.mxu0 0.0
        %2341 = vmatprep.subr.mxu0 0.0
        %2342 = vmatpush1.msra.mxu0 0.0
        %2343 = vmatprep.subr.mxu0 0.0
        %2344 = vmatpush1.msra.mxu0 0.0
        %2345 = vmatprep.subr.mxu0 0.0
        %2346 = vmatpush1.msra.mxu0 0.0
        %2347 = vmatprep.subr.mxu0 0.0
        %2348 = vmatpush1.msra.mxu0 0.0
        %2349 = vmatprep.subr.mxu0 0.0
        %2350 = vmatpush1.msra.mxu0 0.0
        %2351 = vmatprep.subr.mxu0 0.0
        %2352 = vmatpush1.msra.mxu0 0.0
        %2353 = vmatprep.subr.mxu0 0.0
        %2354 = vmatpush1.msra.mxu0 0.0
        %2355 = vmatprep.subr.mxu0 0.0
        %2356 = vmatpush1.msra.mxu0 0.0
        %2357 = vmatprep.subr.mxu0 0.0
        %2358 = vmatpush1.msra.mxu0 0.0
        %2359 = vmatprep.subr.mxu0 0.0
        %2360 = vmatpush1.msra.mxu0 0.0
        %2361 = vmatprep.subr.mxu0 0.0
        %2362 = vmatpush1.msra.mxu0 0.0
        %2363 = vmatprep.subr.mxu0 0.0
        %2364 = vmatpush1.msra.mxu0 0.0
        %2365 = vmatprep.subr.mxu0 0.0
        %2366 = vmatpush1.msra.mxu0 0.0
        %2367 = vmatprep.subr.mxu0 0.0
        %2368 = vmatpush1.msra.mxu0 0.0
        %2369 = vmatprep.subr.mxu0 0.0
        %2370 = vmatpush1.msra.mxu0 0.0
        %2371 = vmatprep.subr.mxu0 0.0
        %2372 = vmatpush1.msra.mxu0 0.0
        %2373 = vmatprep.subr.mxu0 0.0
        %2374 = vmatpush1.msra.mxu0 0.0
        %2375 = vmatprep.mubr.f32.mxu0 0.0
        %2376 = vmatmul.mubr.f32.gmra.mrb[0].mxu0 %v2183
        %v2377 = vpop.f32.mrb[0].mxu0
        %v2378 = vadd.f32 0.0, %v2377
        %v2379 = vpop.f32.mrb[0].mxu0
        %2380 = vmatprep.mubr.f32.mxu0 0.0
        %2381 = vmatmul.mubr.f32.gmra.mrb[0].mxu0 %v2186
        %v2382 = vpop.f32.mrb[0].mxu0
        %v2383 = vadd.f32 0.0, %v2382
        %v2384 = vpop.f32.mrb[0].mxu0
        %2385 = vmatprep.mubr.f32.mxu0 0.0
        %2386 = vmatmul.mubr.f32.gmra.mrb[0].mxu0 %v2189
        %v2387 = vpop.f32.mrb[0].mxu0
        %v2388 = vadd.f32 0.0, %v2387
        %v2389 = vpop.f32.mrb[0].mxu0
        %2390 = vmatprep.mubr.f32.mxu0 0.0
        %2391 = vmatmul.mubr.f32.gmra.mrb[0].mxu0 %v2192
        %v2392 = vpop.f32.mrb[0].mxu0
        %v2393 = vadd.f32 0.0, %v2392
        %v2394 = vpop.f32.mrb[0].mxu0
        %2395 = vmatprep.mubr.f32.mxu0 0.0
        %2396 = vmatmul.mubr.f32.gmra.mrb[0].mxu0 %v2195
        %v2397 = vpop.f32.mrb[0].mxu0
        %v2398 = vadd.f32 0.0, %v2397
        %v2399 = vpop.f32.mrb[0].mxu0
        %2400 = vmatprep.mubr.f32.mxu0 0.0
        %2401 = vmatmul.mubr.f32.gmra.mrb[0].mxu0 %v2198
        %v2402 = vpop.f32.mrb[0].mxu0
        %v2403 = vadd.f32 0.0, %v2402
        %v2404 = vpop.f32.mrb[0].mxu0
        %2405 = vmatprep.mubr.f32.mxu0 0.0
        %2406 = vmatmul.mubr.f32.gmra.mrb[0].mxu0 %v2201
        %v2407 = vpop.f32.mrb[0].mxu0
        %v2408 = vadd.f32 0.0, %v2407
        %v2409 = vpop.f32.mrb[0].mxu0
        %2410 = vmatprep.mubr.f32.mxu0 0.0
        %2411 = vmatmul.mubr.f32.gmra.mrb[0].mxu0 %v2204
        %v2412 = vpop.f32.mrb[0].mxu0
        %v2413 = vadd.f32 0.0, %v2412
        %v2414 = vpop.f32.mrb[0].mxu0
        %2415 = vdwg.mxu0
        %v2416 = vrcp.pop 512.0
        %v2417 = vmul.f32 %v2273, %v2416
        %v2418 = vmul.f32 %v2278, %v2416
        %v2419 = vmul.f32 %v2283, %v2416
        %v2420 = vmul.f32 %v2288, %v2416
        %v2421 = vmul.f32 %v2293, %v2416
        %v2422 = vmul.f32 %v2298, %v2416
        %v2423 = vmul.f32 %v2303, %v2416
        %v2424 = vmul.f32 %v2308, %v2416
        %v2425 = vmul.f32 %v2378, %v2416
        %v2426 = vmul.f32 %v2383, %v2416
        %v2427 = vmul.f32 %v2388, %v2416
        %v2428 = vmul.f32 %v2393, %v2416
        %v2429 = vmul.f32 %v2398, %v2416
        %v2430 = vmul.f32 %v2403, %v2416
        %v2431 = vmul.f32 %v2408, %v2416
        %v2432 = vmul.f32 %v2413, %v2416
        %v2433 = vmul.f32 %v2417, %v2417
        %v2434 = vmul.f32 %v2418, %v2418
        %v2435 = vmul.f32 %v2419, %v2419
        %v2436 = vmul.f32 %v2420, %v2420
        %v2437 = vmul.f32 %v2421, %v2421
        %v2438 = vmul.f32 %v2422, %v2422
        %v2439 = vmul.f32 %v2423, %v2423
        %v2440 = vmul.f32 %v2424, %v2424
        %v2441 = vsub.f32 %v2425, %v2433
        %v2442 = vsub.f32 %v2426, %v2434
        %v2443 = vsub.f32 %v2427, %v2435
        %v2444 = vsub.f32 %v2428, %v2436
        %v2445 = vsub.f32 %v2429, %v2437
        %v2446 = vsub.f32 %v2430, %v2438
        %v2447 = vsub.f32 %v2431, %v2439
        %v2448 = vsub.f32 %v2432, %v2440
        %v2449 = vadd.f32 %v2441, 1e-05
        %v2450 = vadd.f32 %v2442, 1e-05
        %v2451 = vadd.f32 %v2443, 1e-05
        %v2452 = vadd.f32 %v2444, 1e-05
        %v2453 = vadd.f32 %v2445, 1e-05
        %v2454 = vadd.f32 %v2446, 1e-05
        %v2455 = vadd.f32 %v2447, 1e-05
        %v2456 = vadd.f32 %v2448, 1e-05
        %v2457 = vrsqrt.pop %v2449
        %v2458 = vrsqrt.pop %v2450
        %v2459 = vrsqrt.pop %v2451
        %v2460 = vrsqrt.pop %v2452
        %v2461 = vrsqrt.pop %v2453
        %v2462 = vrsqrt.pop %v2454
        %v2463 = vrsqrt.pop %v2455
        %v2464 = vrsqrt.pop %v2456
        %v2465 = vld [vmem:[%s4] sm:$0xff]
        %v2466 = vld [vmem:[%s4 + $0x8] sm:$0xff]
        %v2467 = vld [vmem:[%s4 + $0x10] sm:$0xff]
        %v2468 = vld [vmem:[%s4 + $0x18] sm:$0xff]
        %v2469 = vld [vmem:[%s4 + $0x20] sm:$0xff]
        %v2470 = vld [vmem:[%s4 + $0x28] sm:$0xff]
        %v2471 = vld [vmem:[%s4 + $0x30] sm:$0xff]
        %v2472 = vld [vmem:[%s4 + $0x38] sm:$0xff]
        %v2473 = vmul.f32 %v2457, %v2465
        %v2474 = vmul.f32 %v2458, %v2466
        %v2475 = vmul.f32 %v2459, %v2467
        %v2476 = vmul.f32 %v2460, %v2468
        %v2477 = vmul.f32 %v2461, %v2469
        %v2478 = vmul.f32 %v2462, %v2470
        %v2479 = vmul.f32 %v2463, %v2471
        %v2480 = vmul.f32 %v2464, %v2472
        %v2481 = vsub.f32 %v1891, %v2417
        %v2482 = vsub.f32 %v1892, %v2418
        %v2483 = vsub.f32 %v1893, %v2419
        %v2484 = vsub.f32 %v1894, %v2420
        %v2485 = vsub.f32 %v1895, %v2421
        %v2486 = vsub.f32 %v1896, %v2422
        %v2487 = vsub.f32 %v1897, %v2423
        %v2488 = vsub.f32 %v1898, %v2424
        %v2489 = vmul.f32 %v2481, %v2473
        %v2490 = vmul.f32 %v2482, %v2474
        %v2491 = vmul.f32 %v2483, %v2475
        %v2492 = vmul.f32 %v2484, %v2476
        %v2493 = vmul.f32 %v2485, %v2477
        %v2494 = vmul.f32 %v2486, %v2478
        %v2495 = vmul.f32 %v2487, %v2479
        %v2496 = vmul.f32 %v2488, %v2480
        %v2497 = vld [vmem:[%s5] sm:$0xff]
        %v2498 = vld [vmem:[%s5 + $0x8] sm:$0xff]
        %v2499 = vld [vmem:[%s5 + $0x10] sm:$0xff]
        %v2500 = vld [vmem:[%s5 + $0x18] sm:$0xff]
        %v2501 = vld [vmem:[%s5 + $0x20] sm:$0xff]
        %v2502 = vld [vmem:[%s5 + $0x28] sm:$0xff]
        %v2503 = vld [vmem:[%s5 + $0x30] sm:$0xff]
        %v2504 = vld [vmem:[%s5 + $0x38] sm:$0xff]
        %v2505 = vadd.f32 %v2489, %v2497
        %v2506 = vadd.f32 %v2490, %v2498
        %v2507 = vadd.f32 %v2491, %v2499
        %v2508 = vadd.f32 %v2492, %v2500
        %v2509 = vadd.f32 %v2493, %v2501
        %v2510 = vadd.f32 %v2494, %v2502
        %v2511 = vadd.f32 %v2495, %v2503
        %v2512 = vadd.f32 %v2496, %v2504
        %2514 = vset.pattern.permute.xlu0 0
        %2515 = vperm.xlu0 %2514, %v2473
        %v2516 = vpop.permute.xlu0 %2515
        %2519 = vset.pattern.permute.xlu0 0
        %2520 = vperm.xlu0 %2519, %v2474
        %v2521 = vpop.permute.xlu0 %2520
        %2524 = vset.pattern.permute.xlu0 0
        %2525 = vperm.xlu0 %2524, %v2475
        %v2526 = vpop.permute.xlu0 %2525
        %2529 = vset.pattern.permute.xlu0 0
        %2530 = vperm.xlu0 %2529, %v2476
        %v2531 = vpop.permute.xlu0 %2530
        %2534 = vset.pattern.permute.xlu0 0
        %2535 = vperm.xlu0 %2534, %v2477
        %v2536 = vpop.permute.xlu0 %2535
        %2539 = vset.pattern.permute.xlu0 0
        %2540 = vperm.xlu0 %2539, %v2478
        %v2541 = vpop.permute.xlu0 %2540
        %2544 = vset.pattern.permute.xlu0 0
        %2545 = vperm.xlu0 %2544, %v2479
        %v2546 = vpop.permute.xlu0 %2545
        %2549 = vset.pattern.permute.xlu0 0
        %2550 = vperm.xlu0 %2549, %v2480
        %v2551 = vpop.permute.xlu0 %2550
        %v2553 = vmul.f32 %v1875, %v2516
        %v2554 = vmul.f32 %v1876, %v2516
        %v2555 = vmul.f32 %v1877, %v2521
        %v2556 = vmul.f32 %v1878, %v2521
        %v2557 = vmul.f32 %v1879, %v2526
        %v2558 = vmul.f32 %v1880, %v2526
        %v2559 = vmul.f32 %v1881, %v2531
        %v2560 = vmul.f32 %v1882, %v2531
        %v2561 = vmul.f32 %v1883, %v2536
        %v2562 = vmul.f32 %v1884, %v2536
        %v2563 = vmul.f32 %v1885, %v2541
        %v2564 = vmul.f32 %v1886, %v2541
        %v2565 = vmul.f32 %v1887, %v2546
        %v2566 = vmul.f32 %v1888, %v2546
        %v2567 = vmul.f32 %v1889, %v2551
        %v2568 = vmul.f32 %v1890, %v2551
        %2570 = vset.pattern.permute.xlu0 0
        %2571 = vperm.xlu0 %2570, %v2505
        %v2572 = vpop.permute.xlu0 %2571
        %2575 = vset.pattern.permute.xlu0 0
        %2576 = vperm.xlu0 %2575, %v2506
        %v2577 = vpop.permute.xlu0 %2576
        %2580 = vset.pattern.permute.xlu0 0
        %2581 = vperm.xlu0 %2580, %v2507
        %v2582 = vpop.permute.xlu0 %2581
        %2585 = vset.pattern.permute.xlu0 0
        %2586 = vperm.xlu0 %2585, %v2508
        %v2587 = vpop.permute.xlu0 %2586
        %2590 = vset.pattern.permute.xlu0 0
        %2591 = vperm.xlu0 %2590, %v2509
        %v2592 = vpop.permute.xlu0 %2591
        %2595 = vset.pattern.permute.xlu0 0
        %2596 = vperm.xlu0 %2595, %v2510
        %v2597 = vpop.permute.xlu0 %2596
        %2600 = vset.pattern.permute.xlu0 0
        %2601 = vperm.xlu0 %2600, %v2511
        %v2602 = vpop.permute.xlu0 %2601
        %2605 = vset.pattern.permute.xlu0 0
        %2606 = vperm.xlu0 %2605, %v2512
        %v2607 = vpop.permute.xlu0 %2606
        %v2609 = vadd.f32 %v2553, %v2572
        %v2610 = vadd.f32 %v2554, %v2572
        %v2611 = vadd.f32 %v2555, %v2577
        %v2612 = vadd.f32 %v2556, %v2577
        %v2613 = vadd.f32 %v2557, %v2582
        %v2614 = vadd.f32 %v2558, %v2582
        %v2615 = vadd.f32 %v2559, %v2587
        %v2616 = vadd.f32 %v2560, %v2587
        %v2617 = vadd.f32 %v2561, %v2592
        %v2618 = vadd.f32 %v2562, %v2592
        %v2619 = vadd.f32 %v2563, %v2597
        %v2620 = vadd.f32 %v2564, %v2597
        %v2621 = vadd.f32 %v2565, %v2602
        %v2622 = vadd.f32 %v2566, %v2602
        %v2623 = vadd.f32 %v2567, %v2607
        %v2624 = vadd.f32 %v2568, %v2607
        %v2625 = vmax.f32 %v2609, 0.0
        %v2626 = vmax.f32 %v2610, 0.0
        %v2627 = vmax.f32 %v2611, 0.0
        %v2628 = vmax.f32 %v2612, 0.0
        %v2629 = vmax.f32 %v2613, 0.0
        %v2630 = vmax.f32 %v2614, 0.0
        %v2631 = vmax.f32 %v2615, 0.0
        %v2632 = vmax.f32 %v2616, 0.0
        %v2633 = vmax.f32 %v2617, 0.0
        %v2634 = vmax.f32 %v2618, 0.0
        %v2635 = vmax.f32 %v2619, 0.0
        %v2636 = vmax.f32 %v2620, 0.0
        %v2637 = vmax.f32 %v2621, 0.0
        %v2638 = vmax.f32 %v2622, 0.0
        %v2639 = vmax.f32 %v2623, 0.0
        %v2640 = vmax.f32 %v2624, 0.0
        %2641 = vst [vmem:[%s244] sm:$0xff] %v2625
        %2642 = vst [vmem:[%s244 + $0x8] sm:$0xff] %v2626
        %2643 = vst [vmem:[%s244 + $0x10] sm:$0xff] %v2627
        %2644 = vst [vmem:[%s244 + $0x18] sm:$0xff] %v2628
        %2645 = vst [vmem:[%s244 + $0x20] sm:$0xff] %v2629
        %2646 = vst [vmem:[%s244 + $0x28] sm:$0xff] %v2630
        %2647 = vst [vmem:[%s244 + $0x30] sm:$0xff] %v2631
        %2648 = vst [vmem:[%s244 + $0x38] sm:$0xff] %v2632
        %2649 = vst [vmem:[%s244 + $0x40] sm:$0xff] %v2633
        %2650 = vst [vmem:[%s244 + $0x48] sm:$0xff] %v2634
        %2651 = vst [vmem:[%s244 + $0x50] sm:$0xff] %v2635
        %2652 = vst [vmem:[%s244 + $0x58] sm:$0xff] %v2636
        %2653 = vst [vmem:[%s244 + $0x60] sm:$0xff] %v2637
        %2654 = vst [vmem:[%s244 + $0x68] sm:$0xff] %v2638
        %2655 = vst [vmem:[%s244 + $0x70] sm:$0xff] %v2639
        %2656 = vst [vmem:[%s244 + $0x78] sm:$0xff] %v2640
        %s2657 = sand.u32 %s159, 1
        %s2658 = scalar_lea.sflag [#allocation3], %s2657
        %s2659 = sand.u32 %s159, 1
        %s2660 = smul.addr %s2659, 128
        %s2661 = scalar_lea.vmem [#allocation2], %s2660
        // Predicated region
        $region45: #{tpu_custom_call.1} parent=43 // pred_check
          %p2662 = pneg %p169
        $region46: #{tpu_custom_call.1} parent=43 // pred_check_branch
          %2664 = sbr.rel (%p2662) target = $region48
        $region47: #{tpu_custom_call.1} parent=43 // pred_region
          %s2666 = ssub.s32 2048, 2048
          %2667 = vsyncadd %s2658, %s2666
          %s2668 = smul.addr %s20, 16
          %s2669 = smul.addr %s2668, 128
          %s2670 = scalar_lea.hbm %s6, %s2669
          %s2671 = sshll.u32 %s2661, 4
          %s2672 = int_to_ptr.vmem [resolvable:$true] %s2671
          %2677 = dma.vmem_to_hbm [thread:$0]  %s2672, 2048, %s2670, %s2658, 256, 256, 16
        $region48: #{tpu_custom_call.1} parent=43 // pred_fallthru
          _
      $region44: #{tpu_custom_call.1} parent=5 // pred_fallthru
        _
      %p2678 = scmp.le.s32.totalorder 2, %s15
      // Predicated region
      $region49: #{tpu_custom_call.1} parent=5 // pred_check
        %p2679 = pneg %p2678
      $region50: #{tpu_custom_call.1} parent=5 // pred_check_branch
        %2681 = sbr.rel (%p2679) target = $region52
      $region51: #{tpu_custom_call.1} parent=5 // pred_region
        %s2682 = ssub.s32 %s15, 2
        // Predicated region
        $region53: #{tpu_custom_call.1} parent=51 // pred_check
          %p2683 = pneg %p175
        $region54: #{tpu_custom_call.1} parent=51 // pred_check_branch
          %2685 = sbr.rel (%p2683) target = $region56
        $region55: #{tpu_custom_call.1} parent=51 // pred_region
          %s2686 = sand.u32 %s160, 1
          %s2687 = scalar_lea.sflag [#allocation3], %s2686
          %s2688 = sand.u32 %s160, 1
          %s2689 = smul.addr %s2688, 128
          %s2690 = scalar_lea.vmem [#allocation2], %s2689
          %2691 = dma.done %s2687, 2048
        $region56: #{tpu_custom_call.1} parent=51 // pred_fallthru
          _
      $region52: #{tpu_custom_call.1} parent=5 // pred_fallthru
        _
    $region6: #{tpu_custom_call.1} parent=1 // loop_footer
      %s19 = sadd.s32 1, %s15
    $region7: #{tpu_custom_call.1} parent=1 // loop_footer_branch
      %14 = sbr.rel target = $region3
    $region8: #{tpu_custom_call.1} parent=1 // loop_exit
      _
    %2692 = vsyncpa [#allocation3], 1
    %s2693 = scalar_lea.sflag [#allocation3], 1
    %2694 = vsyncpa %s2693, 1

</llo_original>
